<compile_context>
chip_gen: v5e
topology: v5e:2x2
jax: 0.10.0
libtpu: 0.0.40
codegen_flags: <defaults>
</compile_context>

<pallas_src>
import functools

import jax
import jax.numpy as jnp
from jax.experimental import pallas as pl
from jax.experimental.pallas import tpu as pltpu


def _round_up(x, m):
    return ((x + m - 1) // m) * m


def a2c_actor_kernel(x_ref,
                     w1_ref, b1_ref,
                     w2_ref, b2_ref,
                     w3_ref, b3_ref,
                     w4_ref, b4_ref,
                     out_ref):
    # bf16 operands on the MXU, f32 accumulation; tanh computed in f32 (safe on
    # all generations incl. v5e), result stored back as bf16 to keep the live
    # activation footprint / spill bytes halved.
    h1 = jnp.tanh(
        jnp.dot(x_ref[...], w1_ref[...],
                preferred_element_type=jnp.float32) + b1_ref[...]
    ).astype(jnp.bfloat16)
    h2 = jnp.tanh(
        jnp.dot(h1, w2_ref[...],
                preferred_element_type=jnp.float32) + b2_ref[...]
    ).astype(jnp.bfloat16)
    h3 = jnp.tanh(
        jnp.dot(h2, w3_ref[...],
                preferred_element_type=jnp.float32) + b3_ref[...]
    ).astype(jnp.bfloat16)
    # Final Linear (lane-padded to 128 outputs) -> Softmax. Padded lanes carry
    # bias -1e30 -> exp underflows to exactly 0, so the softmax over the real
    # action lanes is numerically unchanged.
    logits = (jnp.dot(h3, w4_ref[...],
                      preferred_element_type=jnp.float32) + b4_ref[...])
    m = jnp.max(logits, axis=-1, keepdims=True)
    e = jnp.exp(logits - m)
    # Exact divide so rows sum to 1 to f32 precision (Categorical-safe).
    out_ref[...] = e / jnp.sum(e, axis=-1, keepdims=True)


def _choose_tb(B):
    """Small batches: one grid step. Large batches: 256-row tiles (fills the
    256-row MXU on v6e/v7x, >=128 for v5e) with batch-parallel pipelining."""
    b8 = _round_up(B, 8)
    if b8 <= 1024:
        return b8
    return 256


@functools.partial(jax.jit, static_argnames=())
def a2c_actor_forward(x, params):
    """x: [B, state_size] f32; params: bf16 weights [in,out], f32 biases [1,out]."""
    (w1, b1, w2, b2, w3, b3, w4, b4) = params
    B, S = x.shape
    H1 = w1.shape[1]
    H2 = w2.shape[1]
    A = w4.shape[1]
    A_pad = _round_up(max(A, 128), 128)     # lane-dense output width (keep 128)

    tb = _choose_tb(B)
    B_pad = _round_up(B, tb)
    grid = (B_pad // tb,)

    # Pad batch rows with zeros, cast X to bf16 once (halves X DMA bytes).
    x_p = x if B_pad == B else jnp.pad(x, ((0, B_pad - B), (0, 0)))
    x_p = x_p.astype(jnp.bfloat16)
    # Pad final layer to 128 lanes with a very negative pad bias so the padded
    # probabilities are exactly zero.
    w4_p = jnp.zeros((H2, A_pad), w4.dtype).at[:, :A].set(w4)
    b4_p = jnp.full((1, A_pad), -1e30, jnp.float32).at[:, :A].set(b4)

    # Constant index_map -> weights/biases stay VMEM-resident across grid steps
    # (no re-DMA between batch tiles).
    resident = lambda arr: pl.BlockSpec(arr.shape, lambda i: (0, 0))

    weight_bytes = sum(int(a.size) * a.dtype.itemsize
                       for a in (w1, b1, w2, b2, w3, b3, w4_p, b4_p))
    cost = pl.CostEstimate(
        flops=2 * B_pad * (S * H1 + H1 * H2 + H2 * H2 + H2 * A_pad),
        transcendentals=B_pad * (H1 + H2 + H2 + A_pad),
        bytes_accessed=weight_bytes + int(x_p.size) * 2 + B_pad * A_pad * 4,
    )

    out_padded = pl.pallas_call(
        a2c_actor_kernel,
        out_shape=jax.ShapeDtypeStruct((B_pad, A_pad), jnp.float32),
        grid=grid,
        in_specs=[
            pl.BlockSpec((tb, S), lambda i: (i, 0)),   # X: tiled over batch
            resident(w1), resident(b1),                # weights: VMEM-resident
            resident(w2), resident(b2),
            resident(w3), resident(b3),
            resident(w4_p), resident(b4_p),
        ],
        out_specs=pl.BlockSpec((tb, A_pad), lambda i: (i, 0)),
        compiler_params=pltpu.CompilerParams(
            dimension_semantics=("parallel",),
            vmem_limit_bytes=8 << 20,
        ),
        cost_estimate=cost,
    )(x_p, w1, b1, w2, b2, w3, b3, w4_p, b4_p)

    return out_padded[:B, :A]


def init_params(key, state_size, hidsize1, hidsize2, action_size):
    """Deterministic init mimicking torch.nn.Linear default:
    U(-1/sqrt(fan_in), 1/sqrt(fan_in)). Weights stored bf16, biases f32."""
    dims = [(state_size, hidsize1),
            (hidsize1, hidsize2),
            (hidsize2, hidsize2),
            (hidsize2, action_size)]
    params = []
    keys = jax.random.split(key, 2 * len(dims))
    for i, (fan_in, fan_out) in enumerate(dims):
        bound = 1.0 / jnp.sqrt(jnp.float32(fan_in))
        w = jax.random.uniform(keys[2 * i], (fan_in, fan_out),
                               minval=-bound, maxval=bound,
                               dtype=jnp.float32).astype(jnp.bfloat16)
        b = jax.random.uniform(keys[2 * i + 1], (1, fan_out),
                               minval=-bound, maxval=bound, dtype=jnp.float32)
        params += [w, b]
    return tuple(params)


def reference_forward(x, params):
    """Pure-JAX reference replicating the kernel's mixed precision
    (bf16 operands + bf16 stored activations, f32 accumulation)."""
    (w1, b1, w2, b2, w3, b3, w4, b4) = params

    def lin(h, w, b):
        return jnp.dot(h, w, preferred_element_type=jnp.float32) + b

    h = x.astype(jnp.bfloat16)
    h = jnp.tanh(lin(h, w1, b1)).astype(jnp.bfloat16)
    h = jnp.tanh(lin(h, w2, b2)).astype(jnp.bfloat16)
    h = jnp.tanh(lin(h, w3, b3)).astype(jnp.bfloat16)
    logits = lin(h, w4, b4)
    return jax.nn.softmax(logits, axis=-1)


if __name__ == "__main__":
    # Small, module-consistent shapes. Small batch -> single grid step.
    B = 64           # batch (e.g. env states)
    STATE = 32       # state_size
    H1 = 512         # hidsize1 (module default)
    H2 = 256         # hidsize2 (module default)
    A = 5            # action_size (flatland: 5 actions)

    key = jax.random.PRNGKey(0)
    kx, kp = jax.random.split(key)
    x = jax.random.normal(kx, (B, STATE), dtype=jnp.float32)
    params = init_params(kp, STATE, H1, H2, A)

    probs = a2c_actor_forward(x, params)          # grid = (1,)
    probs = jax.block_until_ready(probs)

    ref = reference_forward(x, params)
    assert probs.shape == (B, A)
    # Tolerance accounts for bf16 operands/activations (reference matches path).
    assert jnp.allclose(probs, ref, atol=2e-3, rtol=2e-3), "mismatch vs JAX reference"
    assert jnp.allclose(jnp.sum(probs, axis=-1), 1.0, atol=1e-4), \
        "softmax rows must sum to 1"

    # TODO(synk): get_actor_dist's Categorical sampling and save/load are
    # host-side utilities, not part of the forward pass translated here.
    print("KERNEL_OK")
</pallas_src>

<mosaic_0001>
module attributes {stable_mosaic.version = 11 : i64} {
  func.func @a2c_actor_kernel(%arg0: i32, %arg1: memref<64x32xbf16, #tpu.memory_space<vmem>>, %arg2: memref<32x512xbf16, #tpu.memory_space<vmem>>, %arg3: memref<1x512xf32, #tpu.memory_space<vmem>>, %arg4: memref<512x256xbf16, #tpu.memory_space<vmem>>, %arg5: memref<1x256xf32, #tpu.memory_space<vmem>>, %arg6: memref<256x256xbf16, #tpu.memory_space<vmem>>, %arg7: memref<1x256xf32, #tpu.memory_space<vmem>>, %arg8: memref<256x128xbf16, #tpu.memory_space<vmem>>, %arg9: memref<1x128xf32, #tpu.memory_space<vmem>>, %arg10: memref<64x128xf32, #tpu.memory_space<vmem>>) attributes {dimension_semantics = [#tpu.dimension_semantics<parallel>], iteration_bounds = array<i64: 1>, scalar_prefetch = 0 : i64, scratch_operands = 0 : i64, tpu.core_type = #tpu.core_type<tc>, window_params = [{transform_indices = @transform_0, window_bounds = array<i64: 64, 32>}, {pipeline_mode = #tpu.pipeline_mode<synchronous>, transform_indices = @transform_1, window_bounds = array<i64: 32, 512>}, {pipeline_mode = #tpu.pipeline_mode<synchronous>, transform_indices = @transform_2, window_bounds = array<i64: 1, 512>}, {pipeline_mode = #tpu.pipeline_mode<synchronous>, transform_indices = @transform_3, window_bounds = array<i64: 512, 256>}, {pipeline_mode = #tpu.pipeline_mode<synchronous>, transform_indices = @transform_4, window_bounds = array<i64: 1, 256>}, {pipeline_mode = #tpu.pipeline_mode<synchronous>, transform_indices = @transform_5, window_bounds = array<i64: 256, 256>}, {pipeline_mode = #tpu.pipeline_mode<synchronous>, transform_indices = @transform_6, window_bounds = array<i64: 1, 256>}, {pipeline_mode = #tpu.pipeline_mode<synchronous>, transform_indices = @transform_7, window_bounds = array<i64: 256, 128>}, {pipeline_mode = #tpu.pipeline_mode<synchronous>, transform_indices = @transform_8, window_bounds = array<i64: 1, 128>}, {transform_indices = @transform_9, window_bounds = array<i64: 64, 128>}]} {
    %c0 = arith.constant 0 : index
    %c0_0 = arith.constant 0 : index
    %0 = vector.load %arg1[%c0, %c0_0] : memref<64x32xbf16, #tpu.memory_space<vmem>>, vector<64x32xbf16>
    %c0_1 = arith.constant 0 : index
    %c0_2 = arith.constant 0 : index
    %1 = vector.load %arg2[%c0_1, %c0_2] : memref<32x512xbf16, #tpu.memory_space<vmem>>, vector<32x512xbf16>
    %cst = arith.constant dense<0.000000e+00> : vector<64x512xf32>
    %2 = tpu.matmul %0, %1, %cst {dimension_numbers = #tpu.dot_dimension_numbers<[1], [0], [0], [1], [0, 0, 1, 1], [], []>} : vector<64x32xbf16>, vector<32x512xbf16>, vector<64x512xf32> -> vector<64x512xf32>
    %c0_3 = arith.constant 0 : index
    %c0_4 = arith.constant 0 : index
    %3 = vector.load %arg3[%c0_3, %c0_4] : memref<1x512xf32, #tpu.memory_space<vmem>>, vector<1x512xf32>
    %4 = vector.broadcast %3 : vector<1x512xf32> to vector<64x512xf32>
    %5 = arith.addf %2, %4 : vector<64x512xf32>
    %6 = math.tanh %5 : vector<64x512xf32>
    %7 = arith.truncf %6 : vector<64x512xf32> to vector<64x512xbf16>
    %c0_5 = arith.constant 0 : index
    %c0_6 = arith.constant 0 : index
    %8 = vector.load %arg4[%c0_5, %c0_6] : memref<512x256xbf16, #tpu.memory_space<vmem>>, vector<512x256xbf16>
    %cst_7 = arith.constant dense<0.000000e+00> : vector<64x256xf32>
    %9 = tpu.matmul %7, %8, %cst_7 {dimension_numbers = #tpu.dot_dimension_numbers<[1], [0], [0], [1], [0, 0, 1, 1], [], []>} : vector<64x512xbf16>, vector<512x256xbf16>, vector<64x256xf32> -> vector<64x256xf32>
    %c0_8 = arith.constant 0 : index
    %c0_9 = arith.constant 0 : index
    %10 = vector.load %arg5[%c0_8, %c0_9] : memref<1x256xf32, #tpu.memory_space<vmem>>, vector<1x256xf32>
    %11 = vector.broadcast %10 : vector<1x256xf32> to vector<64x256xf32>
    %12 = arith.addf %9, %11 : vector<64x256xf32>
    %13 = math.tanh %12 : vector<64x256xf32>
    %14 = arith.truncf %13 : vector<64x256xf32> to vector<64x256xbf16>
    %c0_10 = arith.constant 0 : index
    %c0_11 = arith.constant 0 : index
    %15 = vector.load %arg6[%c0_10, %c0_11] : memref<256x256xbf16, #tpu.memory_space<vmem>>, vector<256x256xbf16>
    %cst_12 = arith.constant dense<0.000000e+00> : vector<64x256xf32>
    %16 = tpu.matmul %14, %15, %cst_12 {dimension_numbers = #tpu.dot_dimension_numbers<[1], [0], [0], [1], [0, 0, 1, 1], [], []>} : vector<64x256xbf16>, vector<256x256xbf16>, vector<64x256xf32> -> vector<64x256xf32>
    %c0_13 = arith.constant 0 : index
    %c0_14 = arith.constant 0 : index
    %17 = vector.load %arg7[%c0_13, %c0_14] : memref<1x256xf32, #tpu.memory_space<vmem>>, vector<1x256xf32>
    %18 = vector.broadcast %17 : vector<1x256xf32> to vector<64x256xf32>
    %19 = arith.addf %16, %18 : vector<64x256xf32>
    %20 = math.tanh %19 : vector<64x256xf32>
    %21 = arith.truncf %20 : vector<64x256xf32> to vector<64x256xbf16>
    %c0_15 = arith.constant 0 : index
    %c0_16 = arith.constant 0 : index
    %22 = vector.load %arg8[%c0_15, %c0_16] : memref<256x128xbf16, #tpu.memory_space<vmem>>, vector<256x128xbf16>
    %cst_17 = arith.constant dense<0.000000e+00> : vector<64x128xf32>
    %23 = tpu.matmul %21, %22, %cst_17 {dimension_numbers = #tpu.dot_dimension_numbers<[1], [0], [0], [1], [0, 0, 1, 1], [], []>} : vector<64x256xbf16>, vector<256x128xbf16>, vector<64x128xf32> -> vector<64x128xf32>
    %c0_18 = arith.constant 0 : index
    %c0_19 = arith.constant 0 : index
    %24 = vector.load %arg9[%c0_18, %c0_19] : memref<1x128xf32, #tpu.memory_space<vmem>>, vector<1x128xf32>
    %25 = vector.broadcast %24 : vector<1x128xf32> to vector<64x128xf32>
    %26 = arith.addf %23, %25 : vector<64x128xf32>
    %cst_20 = arith.constant dense<0xFF800000> : vector<64xf32>
    %27 = vector.multi_reduction <maximumf>, %26, %cst_20 [1] : vector<64x128xf32> to vector<64xf32>
    %28 = vector.shape_cast %27 : vector<64xf32> to vector<64x1xf32>
    %29 = vector.broadcast %28 : vector<64x1xf32> to vector<64x128xf32>
    %30 = arith.subf %26, %29 : vector<64x128xf32>
    %31 = math.exp %30 : vector<64x128xf32>
    %cst_21 = arith.constant dense<0.000000e+00> : vector<64xf32>
    %32 = vector.multi_reduction <add>, %31, %cst_21 [1] : vector<64x128xf32> to vector<64xf32>
    %33 = vector.shape_cast %32 : vector<64xf32> to vector<64x1xf32>
    %34 = vector.broadcast %33 : vector<64x1xf32> to vector<64x128xf32>
    %35 = arith.divf %31, %34 : vector<64x128xf32>
    %c0_22 = arith.constant 0 : index
    %c0_23 = arith.constant 0 : index
    %36 = vector.load %arg10[%c0_22, %c0_23] : memref<64x128xf32, #tpu.memory_space<vmem>>, vector<64x128xf32>
    tpu.vector_store %arg10[%c0_22, %c0_23], %35 {strides = array<i32>} : memref<64x128xf32, #tpu.memory_space<vmem>>, vector<64x128xf32>,
    return
  }
  func.func @transform_0(%arg0: i32) -> (i32, i32) {
    %c0_i32 = arith.constant 0 : i32
    %c0_i32_0 = arith.constant 0 : i32
    return %arg0, %c0_i32 : i32, i32
  }
  func.func @transform_1(%arg0: i32) -> (i32, i32) {
    %c0_i32 = arith.constant 0 : i32
    %c0_i32_0 = arith.constant 0 : i32
    %c0_i32_1 = arith.constant 0 : i32
    return %c0_i32, %c0_i32_0 : i32, i32
  }
  func.func @transform_2(%arg0: i32) -> (i32, i32) {
    %c0_i32 = arith.constant 0 : i32
    %c0_i32_0 = arith.constant 0 : i32
    %c0_i32_1 = arith.constant 0 : i32
    return %c0_i32, %c0_i32_0 : i32, i32
  }
  func.func @transform_3(%arg0: i32) -> (i32, i32) {
    %c0_i32 = arith.constant 0 : i32
    %c0_i32_0 = arith.constant 0 : i32
    %c0_i32_1 = arith.constant 0 : i32
    return %c0_i32, %c0_i32_0 : i32, i32
  }
  func.func @transform_4(%arg0: i32) -> (i32, i32) {
    %c0_i32 = arith.constant 0 : i32
    %c0_i32_0 = arith.constant 0 : i32
    %c0_i32_1 = arith.constant 0 : i32
    return %c0_i32, %c0_i32_0 : i32, i32
  }
  func.func @transform_5(%arg0: i32) -> (i32, i32) {
    %c0_i32 = arith.constant 0 : i32
    %c0_i32_0 = arith.constant 0 : i32
    %c0_i32_1 = arith.constant 0 : i32
    return %c0_i32, %c0_i32_0 : i32, i32
  }
  func.func @transform_6(%arg0: i32) -> (i32, i32) {
    %c0_i32 = arith.constant 0 : i32
    %c0_i32_0 = arith.constant 0 : i32
    %c0_i32_1 = arith.constant 0 : i32
    return %c0_i32, %c0_i32_0 : i32, i32
  }
  func.func @transform_7(%arg0: i32) -> (i32, i32) {
    %c0_i32 = arith.constant 0 : i32
    %c0_i32_0 = arith.constant 0 : i32
    %c0_i32_1 = arith.constant 0 : i32
    return %c0_i32, %c0_i32_0 : i32, i32
  }
  func.func @transform_8(%arg0: i32) -> (i32, i32) {
    %c0_i32 = arith.constant 0 : i32
    %c0_i32_0 = arith.constant 0 : i32
    %c0_i32_1 = arith.constant 0 : i32
    return %c0_i32, %c0_i32_0 : i32, i32
  }
  func.func @transform_9(%arg0: i32) -> (i32, i32) {
    %c0_i32 = arith.constant 0 : i32
    %c0_i32_0 = arith.constant 0 : i32
    return %arg0, %c0_i32 : i32, i32
  }
}

</mosaic_0001>

<llo_original>
// kernel: a2c_actor_forward.1
$region0: #{a2c_actor_forward.1}
  #allocation0 [shape = 'u32[]', space=smem, size = 0x4, offset = 0x4, fixed_abs, tag = 'smem constant byte address 0x4 - core index']
  #allocation1 [shape = 'u32[72,128]{1,0:T(1,128)}', space=vmem, size = 0x9000, scoped, tag = 'internal scratch']
  %s0 = inlined_call_operand.vmem [shape: bf16[64,32], index: 0, kind: input, shape index: {}]
  %s1 = inlined_call_operand.vmem [shape: bf16[32,512], index: 1, kind: input, shape index: {}]
  %s2 = inlined_call_operand.vmem [shape: f32[1,512], index: 2, kind: input, shape index: {}]
  %s3 = inlined_call_operand.vmem [shape: bf16[512,256], index: 3, kind: input, shape index: {}]
  %s4 = inlined_call_operand.vmem [shape: f32[1,256], index: 4, kind: input, shape index: {}]
  %s5 = inlined_call_operand.hbm [shape: bf16[256,256], index: 5, kind: input, shape index: {}]
  %s6 = inlined_call_operand.vmem [shape: f32[1,256], index: 6, kind: input, shape index: {}]
  %s7 = inlined_call_operand.vmem [shape: bf16[256,128], index: 7, kind: input, shape index: {}]
  %s8 = inlined_call_operand.vmem [shape: f32[1,128], index: 8, kind: input, shape index: {}]
  %s9 = inlined_call_operand.vmem [shape: f32[64,128], index: 9, kind: output, shape index: {}]
  %s10 = sld [smem:[#allocation0]]
  $region50: #{a2c_actor_forward.1} parent=0
    _
  %s12 = ssub.s32 1, %s10
  %s13 = scalar_select 0, %s12, %s10
  $region1: #{a2c_actor_forward.1} parent=0
    #allocation2 [shape = 'u8[131072]{0}', space=vmem, size = 0x20000, scoped, tag = 'input window, operand 5, single buffered']
    #allocation3 [shape = 's32[1]{0}', space=sflag, size = 0x4, scoped, tag = 'scoped memory for a2c_actor_forward.1']
    %14 = vsyncpa [#allocation3], 0
    // Predicated region
    $region2: #{a2c_actor_forward.1} parent=1 // pred_check
      _
    $region3: #{a2c_actor_forward.1} parent=1 // pred_check_branch
      %16 = sbr.rel (0) target = $region5
    $region4: #{a2c_actor_forward.1} parent=1 // pred_region
      _
    $region5: #{a2c_actor_forward.1} parent=1 // pred_fallthru
      _
    // Predicated region
    $region6: #{a2c_actor_forward.1} parent=1 // pred_check
      _
    $region7: #{a2c_actor_forward.1} parent=1 // pred_check_branch
      %18 = sbr.rel (0) target = $region9
    $region8: #{a2c_actor_forward.1} parent=1 // pred_region
      _
    $region9: #{a2c_actor_forward.1} parent=1 // pred_fallthru
      _
    // Predicated region
    $region10: #{a2c_actor_forward.1} parent=1 // pred_check
      _
    $region11: #{a2c_actor_forward.1} parent=1 // pred_check_branch
      %20 = sbr.rel (0) target = $region13
    $region12: #{a2c_actor_forward.1} parent=1 // pred_region
      _
    $region13: #{a2c_actor_forward.1} parent=1 // pred_fallthru
      _
    // Predicated region
    $region14: #{a2c_actor_forward.1} parent=1 // pred_check
      _
    $region15: #{a2c_actor_forward.1} parent=1 // pred_check_branch
      %22 = sbr.rel (0) target = $region17
    $region16: #{a2c_actor_forward.1} parent=1 // pred_region
      _
    $region17: #{a2c_actor_forward.1} parent=1 // pred_fallthru
      _
    // Predicated region
    $region18: #{a2c_actor_forward.1} parent=1 // pred_check
      _
    $region19: #{a2c_actor_forward.1} parent=1 // pred_check_branch
      %24 = sbr.rel (0) target = $region21
    $region20: #{a2c_actor_forward.1} parent=1 // pred_region
      _
    $region21: #{a2c_actor_forward.1} parent=1 // pred_fallthru
      _
    // Predicated region
    $region22: #{a2c_actor_forward.1} parent=1 // pred_check
      _
    $region23: #{a2c_actor_forward.1} parent=1 // pred_check_branch
      %26 = sbr.rel (0) target = $region25
    $region24: #{a2c_actor_forward.1} parent=1 // pred_region
      %28 = vsyncadd [#allocation3], 0
      %s29 = sshll.u32 %s5, 4
      %s30 = int_to_ptr.hbm [resolvable:$true] %s29
      %s31 = sshll.u32 [#allocation2], 4
      %s32 = int_to_ptr.vmem [resolvable:$true] %s31
      %37 = dma.hbm_to_vmem [thread:$0]  %s30, 4096, %s32, [#allocation3], 128, 128, 8
    $region25: #{a2c_actor_forward.1} parent=1 // pred_fallthru
      _
    // Predicated region
    $region26: #{a2c_actor_forward.1} parent=1 // pred_check
      _
    $region27: #{a2c_actor_forward.1} parent=1 // pred_check_branch
      %39 = sbr.rel (0) target = $region29
    $region28: #{a2c_actor_forward.1} parent=1 // pred_region
      _
    $region29: #{a2c_actor_forward.1} parent=1 // pred_fallthru
      _
    // Predicated region
    $region30: #{a2c_actor_forward.1} parent=1 // pred_check
      _
    $region31: #{a2c_actor_forward.1} parent=1 // pred_check_branch
      %41 = sbr.rel (0) target = $region33
    $region32: #{a2c_actor_forward.1} parent=1 // pred_region
      _
    $region33: #{a2c_actor_forward.1} parent=1 // pred_fallthru
      _
    // Predicated region
    $region34: #{a2c_actor_forward.1} parent=1 // pred_check
      _
    $region35: #{a2c_actor_forward.1} parent=1 // pred_check_branch
      %43 = sbr.rel (0) target = $region37
    $region36: #{a2c_actor_forward.1} parent=1 // pred_region
      _
    $region37: #{a2c_actor_forward.1} parent=1 // pred_fallthru
      _
    // Predicated region
    $region38: #{a2c_actor_forward.1} parent=1 // pred_check
      _
    $region39: #{a2c_actor_forward.1} parent=1 // pred_check_branch
      %45 = sbr.rel (0) target = $region41
    $region40: #{a2c_actor_forward.1} parent=1 // pred_region
      %47 = dma.done [#allocation3], 4096
    $region41: #{a2c_actor_forward.1} parent=1 // pred_fallthru
      _
    %v49 = vld [vmem:[%s0] sm:$0xf]
    %v50 = vld [vmem:[%s0 + $0x4] sm:$0xf]
    %v51 = vld [vmem:[%s0 + $0x8] sm:$0xf]
    %v52 = vld [vmem:[%s0 + $0xc] sm:$0xf]
    %v53 = vld [vmem:[%s0 + $0x10] sm:$0xf]
    %v54 = vld [vmem:[%s0 + $0x14] sm:$0xf]
    %v55 = vld [vmem:[%s0 + $0x18] sm:$0xf]
    %v56 = vld [vmem:[%s0 + $0x1c] sm:$0xf]
    %v57 = vld [vmem:[%s1] sm:$0xff]
    %v58 = vld [vmem:[%s1 + $0x8] sm:$0xff]
    %v59 = vld [vmem:[%s1 + $0x10] sm:$0xff]
    %v60 = vld [vmem:[%s1 + $0x18] sm:$0xff]
    %v61 = vld [vmem:[%s1 + $0x20] sm:$0xff]
    %v62 = vld [vmem:[%s1 + $0x28] sm:$0xff]
    %v63 = vld [vmem:[%s1 + $0x30] sm:$0xff]
    %v64 = vld [vmem:[%s1 + $0x38] sm:$0xff]
    %v65 = vld [vmem:[%s2] sm:$0xf]
    %v67 = vperm.slane %v65, 0
    %v68 = vperm.slane %v65, 1
    %v69 = vperm.slane %v65, 2
    %v70 = vperm.slane %v65, 3
    %v83 = vunpack.c.l.b16 %v49
    %v84 = vunpack.c.l.b16 %v50
    %v85 = vunpack.c.l.b16 %v51
    %v86 = vunpack.c.l.b16 %v52
    %v87 = vunpack.c.l.b16 %v53
    %v88 = vunpack.c.l.b16 %v54
    %v89 = vunpack.c.l.b16 %v55
    %v90 = vunpack.c.l.b16 %v56
    %v91 = vpack.c.b16 %v84, %v83
    %v92 = vpack.c.b16 %v86, %v85
    %v93 = vpack.c.b16 %v88, %v87
    %v94 = vpack.c.b16 %v90, %v89
    %v103 = vunpack.c.l.b16 %v57
    %v104 = vunpack.c.h.b16 %v57
    %v105 = vunpack.c.l.b16 %v58
    %v106 = vunpack.c.h.b16 %v58
    %v107 = vunpack.c.l.b16 %v59
    %v108 = vunpack.c.h.b16 %v59
    %v109 = vunpack.c.l.b16 %v60
    %v110 = vunpack.c.h.b16 %v60
    %v111 = vunpack.c.l.b16 %v61
    %v112 = vunpack.c.h.b16 %v61
    %v113 = vunpack.c.l.b16 %v62
    %v114 = vunpack.c.h.b16 %v62
    %v115 = vunpack.c.l.b16 %v63
    %v116 = vunpack.c.h.b16 %v63
    %v117 = vunpack.c.l.b16 %v64
    %v118 = vunpack.c.h.b16 %v64
    %v119 = vpack.c.b16 %v107, %v103
    %v120 = vpack.c.b16 %v108, %v104
    %v121 = vpack.c.b16 %v109, %v105
    %v122 = vpack.c.b16 %v110, %v106
    %v123 = vpack.c.b16 %v115, %v111
    %v124 = vpack.c.b16 %v116, %v112
    %v125 = vpack.c.b16 %v117, %v113
    %v126 = vpack.c.b16 %v118, %v114
    %vm135 = vcmask 261120
    %v137 = vsel %vm135, %v91, 0
    %v140 = vsel %vm135, %v92, 0
    %v143 = vsel %vm135, %v93, 0
    %v146 = vsel %vm135, %v94, 0
    %148 = vmatpush.bf16.msra.mxu0 0
    %149 = vmatpush.bf16.msra.mxu0 0
    %150 = vmatpush.bf16.msra.mxu0 0
    %151 = vmatpush.bf16.msra.mxu0 0
    %152 = vmatpush.bf16.msra.mxu0 0
    %153 = vmatpush.bf16.msra.mxu0 0
    %154 = vmatpush.bf16.msra.mxu0 %v123
    %155 = vmatpush.bf16.msra.mxu0 %v119
    %156 = vmatmul.bf16.gmra.mxu0 %v137
    %v157 = vpop.f32.mrf.mxu0
    %v158 = vadd.f32 %v67, %v157
    %v159 = vpop.f32.mrf.mxu0
    %v160 = vadd.f32 %v67, %v159
    %161 = vmatmul.bf16.gmra.mxu0 %v140
    %v162 = vpop.f32.mrf.mxu0
    %v163 = vadd.f32 %v67, %v162
    %v164 = vpop.f32.mrf.mxu0
    %v165 = vadd.f32 %v67, %v164
    %166 = vmatmul.bf16.gmra.mxu0 %v143
    %v167 = vpop.f32.mrf.mxu0
    %v168 = vadd.f32 %v67, %v167
    %v169 = vpop.f32.mrf.mxu0
    %v170 = vadd.f32 %v67, %v169
    %171 = vmatmul.bf16.gmra.mxu0 %v146
    %v172 = vpop.f32.mrf.mxu0
    %v173 = vadd.f32 %v67, %v172
    %v174 = vpop.f32.mrf.mxu0
    %v175 = vadd.f32 %v67, %v174
    %176 = vdwg.mxu0
    %177 = vmatpush.bf16.msra.mxu0 0
    %178 = vmatpush.bf16.msra.mxu0 0
    %179 = vmatpush.bf16.msra.mxu0 0
    %180 = vmatpush.bf16.msra.mxu0 0
    %181 = vmatpush.bf16.msra.mxu0 0
    %182 = vmatpush.bf16.msra.mxu0 0
    %183 = vmatpush.bf16.msra.mxu0 %v124
    %184 = vmatpush.bf16.msra.mxu0 %v120
    %185 = vmatmul.bf16.gmra.mxu0 %v137
    %v186 = vpop.f32.mrf.mxu0
    %v187 = vadd.f32 %v68, %v186
    %v188 = vpop.f32.mrf.mxu0
    %v189 = vadd.f32 %v68, %v188
    %190 = vmatmul.bf16.gmra.mxu0 %v140
    %v191 = vpop.f32.mrf.mxu0
    %v192 = vadd.f32 %v68, %v191
    %v193 = vpop.f32.mrf.mxu0
    %v194 = vadd.f32 %v68, %v193
    %195 = vmatmul.bf16.gmra.mxu0 %v143
    %v196 = vpop.f32.mrf.mxu0
    %v197 = vadd.f32 %v68, %v196
    %v198 = vpop.f32.mrf.mxu0
    %v199 = vadd.f32 %v68, %v198
    %200 = vmatmul.bf16.gmra.mxu0 %v146
    %v201 = vpop.f32.mrf.mxu0
    %v202 = vadd.f32 %v68, %v201
    %v203 = vpop.f32.mrf.mxu0
    %v204 = vadd.f32 %v68, %v203
    %205 = vdwg.mxu0
    %206 = vmatpush.bf16.msra.mxu0 0
    %207 = vmatpush.bf16.msra.mxu0 0
    %208 = vmatpush.bf16.msra.mxu0 0
    %209 = vmatpush.bf16.msra.mxu0 0
    %210 = vmatpush.bf16.msra.mxu0 0
    %211 = vmatpush.bf16.msra.mxu0 0
    %212 = vmatpush.bf16.msra.mxu0 %v125
    %213 = vmatpush.bf16.msra.mxu0 %v121
    %214 = vmatmul.bf16.gmra.mxu0 %v137
    %v215 = vpop.f32.mrf.mxu0
    %v216 = vadd.f32 %v69, %v215
    %v217 = vpop.f32.mrf.mxu0
    %v218 = vadd.f32 %v69, %v217
    %219 = vmatmul.bf16.gmra.mxu0 %v140
    %v220 = vpop.f32.mrf.mxu0
    %v221 = vadd.f32 %v69, %v220
    %v222 = vpop.f32.mrf.mxu0
    %v223 = vadd.f32 %v69, %v222
    %224 = vmatmul.bf16.gmra.mxu0 %v143
    %v225 = vpop.f32.mrf.mxu0
    %v226 = vadd.f32 %v69, %v225
    %v227 = vpop.f32.mrf.mxu0
    %v228 = vadd.f32 %v69, %v227
    %229 = vmatmul.bf16.gmra.mxu0 %v146
    %v230 = vpop.f32.mrf.mxu0
    %v231 = vadd.f32 %v69, %v230
    %v232 = vpop.f32.mrf.mxu0
    %v233 = vadd.f32 %v69, %v232
    %234 = vdwg.mxu0
    %235 = vmatpush.bf16.msra.mxu0 0
    %236 = vmatpush.bf16.msra.mxu0 0
    %237 = vmatpush.bf16.msra.mxu0 0
    %238 = vmatpush.bf16.msra.mxu0 0
    %239 = vmatpush.bf16.msra.mxu0 0
    %240 = vmatpush.bf16.msra.mxu0 0
    %241 = vmatpush.bf16.msra.mxu0 %v126
    %242 = vmatpush.bf16.msra.mxu0 %v122
    %243 = vmatmul.bf16.gmra.mxu0 %v137
    %v244 = vpop.f32.mrf.mxu0
    %v245 = vadd.f32 %v70, %v244
    %v246 = vpop.f32.mrf.mxu0
    %v247 = vadd.f32 %v70, %v246
    %248 = vmatmul.bf16.gmra.mxu0 %v140
    %v249 = vpop.f32.mrf.mxu0
    %v250 = vadd.f32 %v70, %v249
    %v251 = vpop.f32.mrf.mxu0
    %v252 = vadd.f32 %v70, %v251
    %253 = vmatmul.bf16.gmra.mxu0 %v143
    %v254 = vpop.f32.mrf.mxu0
    %v255 = vadd.f32 %v70, %v254
    %v256 = vpop.f32.mrf.mxu0
    %v257 = vadd.f32 %v70, %v256
    %258 = vmatmul.bf16.gmra.mxu0 %v146
    %v259 = vpop.f32.mrf.mxu0
    %v260 = vadd.f32 %v70, %v259
    %v261 = vpop.f32.mrf.mxu0
    %v262 = vadd.f32 %v70, %v261
    %263 = vdwg.mxu0
    %v264 = vtanh.pop %v158
    %v265 = vtanh.pop %v187
    %v266 = vtanh.pop %v216
    %v267 = vtanh.pop %v245
    %v268 = vtanh.pop %v160
    %v269 = vtanh.pop %v189
    %v270 = vtanh.pop %v218
    %v271 = vtanh.pop %v247
    %v272 = vtanh.pop %v163
    %v273 = vtanh.pop %v192
    %v274 = vtanh.pop %v221
    %v275 = vtanh.pop %v250
    %v276 = vtanh.pop %v165
    %v277 = vtanh.pop %v194
    %v278 = vtanh.pop %v223
    %v279 = vtanh.pop %v252
    %v280 = vtanh.pop %v168
    %v281 = vtanh.pop %v197
    %v282 = vtanh.pop %v226
    %v283 = vtanh.pop %v255
    %v284 = vtanh.pop %v170
    %v285 = vtanh.pop %v199
    %v286 = vtanh.pop %v228
    %v287 = vtanh.pop %v257
    %v288 = vtanh.pop %v173
    %v289 = vtanh.pop %v202
    %v290 = vtanh.pop %v231
    %v291 = vtanh.pop %v260
    %v292 = vtanh.pop %v175
    %v293 = vtanh.pop %v204
    %v294 = vtanh.pop %v233
    %v295 = vtanh.pop %v262
    %v296 = vpack.c.bf16 %v268, %v264
    %v297 = vpack.c.bf16 %v269, %v265
    %v298 = vpack.c.bf16 %v270, %v266
    %v299 = vpack.c.bf16 %v271, %v267
    %v300 = vpack.c.bf16 %v276, %v272
    %v301 = vpack.c.bf16 %v277, %v273
    %v302 = vpack.c.bf16 %v278, %v274
    %v303 = vpack.c.bf16 %v279, %v275
    %v304 = vpack.c.bf16 %v284, %v280
    %v305 = vpack.c.bf16 %v285, %v281
    %v306 = vpack.c.bf16 %v286, %v282
    %v307 = vpack.c.bf16 %v287, %v283
    %v308 = vpack.c.bf16 %v292, %v288
    %v309 = vpack.c.bf16 %v293, %v289
    %v310 = vpack.c.bf16 %v294, %v290
    %v311 = vpack.c.bf16 %v295, %v291
    %v312 = vld [vmem:[%s3] sm:$0xff]
    %v313 = vld [vmem:[%s3 + $0x8] sm:$0xff]
    %v314 = vld [vmem:[%s3 + $0x10] sm:$0xff]
    %v315 = vld [vmem:[%s3 + $0x18] sm:$0xff]
    %v316 = vld [vmem:[%s3 + $0x20] sm:$0xff]
    %v317 = vld [vmem:[%s3 + $0x28] sm:$0xff]
    %v318 = vld [vmem:[%s3 + $0x30] sm:$0xff]
    %v319 = vld [vmem:[%s3 + $0x38] sm:$0xff]
    %v320 = vld [vmem:[%s3 + $0x40] sm:$0xff]
    %v321 = vld [vmem:[%s3 + $0x48] sm:$0xff]
    %v322 = vld [vmem:[%s3 + $0x50] sm:$0xff]
    %v323 = vld [vmem:[%s3 + $0x58] sm:$0xff]
    %v324 = vld [vmem:[%s3 + $0x60] sm:$0xff]
    %v325 = vld [vmem:[%s3 + $0x68] sm:$0xff]
    %v326 = vld [vmem:[%s3 + $0x70] sm:$0xff]
    %v327 = vld [vmem:[%s3 + $0x78] sm:$0xff]
    %v328 = vld [vmem:[%s3 + $0x80] sm:$0xff]
    %v329 = vld [vmem:[%s3 + $0x88] sm:$0xff]
    %v330 = vld [vmem:[%s3 + $0x90] sm:$0xff]
    %v331 = vld [vmem:[%s3 + $0x98] sm:$0xff]
    %v332 = vld [vmem:[%s3 + $0xa0] sm:$0xff]
    %v333 = vld [vmem:[%s3 + $0xa8] sm:$0xff]
    %v334 = vld [vmem:[%s3 + $0xb0] sm:$0xff]
    %v335 = vld [vmem:[%s3 + $0xb8] sm:$0xff]
    %v336 = vld [vmem:[%s3 + $0xc0] sm:$0xff]
    %v337 = vld [vmem:[%s3 + $0xc8] sm:$0xff]
    %v338 = vld [vmem:[%s3 + $0xd0] sm:$0xff]
    %v339 = vld [vmem:[%s3 + $0xd8] sm:$0xff]
    %v340 = vld [vmem:[%s3 + $0xe0] sm:$0xff]
    %v341 = vld [vmem:[%s3 + $0xe8] sm:$0xff]
    %v342 = vld [vmem:[%s3 + $0xf0] sm:$0xff]
    %v343 = vld [vmem:[%s3 + $0xf8] sm:$0xff]
    %v344 = vld [vmem:[%s3 + $0x100] sm:$0xff]
    %v345 = vld [vmem:[%s3 + $0x108] sm:$0xff]
    %v346 = vld [vmem:[%s3 + $0x110] sm:$0xff]
    %v347 = vld [vmem:[%s3 + $0x118] sm:$0xff]
    %v348 = vld [vmem:[%s3 + $0x120] sm:$0xff]
    %v349 = vld [vmem:[%s3 + $0x128] sm:$0xff]
    %v350 = vld [vmem:[%s3 + $0x130] sm:$0xff]
    %v351 = vld [vmem:[%s3 + $0x138] sm:$0xff]
    %v352 = vld [vmem:[%s3 + $0x140] sm:$0xff]
    %v353 = vld [vmem:[%s3 + $0x148] sm:$0xff]
    %v354 = vld [vmem:[%s3 + $0x150] sm:$0xff]
    %v355 = vld [vmem:[%s3 + $0x158] sm:$0xff]
    %v356 = vld [vmem:[%s3 + $0x160] sm:$0xff]
    %v357 = vld [vmem:[%s3 + $0x168] sm:$0xff]
    %v358 = vld [vmem:[%s3 + $0x170] sm:$0xff]
    %v359 = vld [vmem:[%s3 + $0x178] sm:$0xff]
    %v360 = vld [vmem:[%s3 + $0x180] sm:$0xff]
    %v361 = vld [vmem:[%s3 + $0x188] sm:$0xff]
    %v362 = vld [vmem:[%s3 + $0x190] sm:$0xff]
    %v363 = vld [vmem:[%s3 + $0x198] sm:$0xff]
    %v364 = vld [vmem:[%s3 + $0x1a0] sm:$0xff]
    %v365 = vld [vmem:[%s3 + $0x1a8] sm:$0xff]
    %v366 = vld [vmem:[%s3 + $0x1b0] sm:$0xff]
    %v367 = vld [vmem:[%s3 + $0x1b8] sm:$0xff]
    %v368 = vld [vmem:[%s3 + $0x1c0] sm:$0xff]
    %v369 = vld [vmem:[%s3 + $0x1c8] sm:$0xff]
    %v370 = vld [vmem:[%s3 + $0x1d0] sm:$0xff]
    %v371 = vld [vmem:[%s3 + $0x1d8] sm:$0xff]
    %v372 = vld [vmem:[%s3 + $0x1e0] sm:$0xff]
    %v373 = vld [vmem:[%s3 + $0x1e8] sm:$0xff]
    %v374 = vld [vmem:[%s3 + $0x1f0] sm:$0xff]
    %v375 = vld [vmem:[%s3 + $0x1f8] sm:$0xff]
    %v376 = vld [vmem:[%s4] sm:$0x3]
    %v378 = vperm.slane %v376, 0
    %v379 = vperm.slane %v376, 1
    %v446 = vunpack.c.l.b16 %v312
    %v447 = vunpack.c.h.b16 %v312
    %v448 = vunpack.c.l.b16 %v313
    %v449 = vunpack.c.h.b16 %v313
    %v450 = vunpack.c.l.b16 %v314
    %v451 = vunpack.c.h.b16 %v314
    %v452 = vunpack.c.l.b16 %v315
    %v453 = vunpack.c.h.b16 %v315
    %v454 = vunpack.c.l.b16 %v316
    %v455 = vunpack.c.h.b16 %v316
    %v456 = vunpack.c.l.b16 %v317
    %v457 = vunpack.c.h.b16 %v317
    %v458 = vunpack.c.l.b16 %v318
    %v459 = vunpack.c.h.b16 %v318
    %v460 = vunpack.c.l.b16 %v319
    %v461 = vunpack.c.h.b16 %v319
    %v462 = vunpack.c.l.b16 %v320
    %v463 = vunpack.c.h.b16 %v320
    %v464 = vunpack.c.l.b16 %v321
    %v465 = vunpack.c.h.b16 %v321
    %v466 = vunpack.c.l.b16 %v322
    %v467 = vunpack.c.h.b16 %v322
    %v468 = vunpack.c.l.b16 %v323
    %v469 = vunpack.c.h.b16 %v323
    %v470 = vunpack.c.l.b16 %v324
    %v471 = vunpack.c.h.b16 %v324
    %v472 = vunpack.c.l.b16 %v325
    %v473 = vunpack.c.h.b16 %v325
    %v474 = vunpack.c.l.b16 %v326
    %v475 = vunpack.c.h.b16 %v326
    %v476 = vunpack.c.l.b16 %v327
    %v477 = vunpack.c.h.b16 %v327
    %v478 = vunpack.c.l.b16 %v328
    %v479 = vunpack.c.h.b16 %v328
    %v480 = vunpack.c.l.b16 %v329
    %v481 = vunpack.c.h.b16 %v329
    %v482 = vunpack.c.l.b16 %v330
    %v483 = vunpack.c.h.b16 %v330
    %v484 = vunpack.c.l.b16 %v331
    %v485 = vunpack.c.h.b16 %v331
    %v486 = vunpack.c.l.b16 %v332
    %v487 = vunpack.c.h.b16 %v332
    %v488 = vunpack.c.l.b16 %v333
    %v489 = vunpack.c.h.b16 %v333
    %v490 = vunpack.c.l.b16 %v334
    %v491 = vunpack.c.h.b16 %v334
    %v492 = vunpack.c.l.b16 %v335
    %v493 = vunpack.c.h.b16 %v335
    %v494 = vunpack.c.l.b16 %v336
    %v495 = vunpack.c.h.b16 %v336
    %v496 = vunpack.c.l.b16 %v337
    %v497 = vunpack.c.h.b16 %v337
    %v498 = vunpack.c.l.b16 %v338
    %v499 = vunpack.c.h.b16 %v338
    %v500 = vunpack.c.l.b16 %v339
    %v501 = vunpack.c.h.b16 %v339
    %v502 = vunpack.c.l.b16 %v340
    %v503 = vunpack.c.h.b16 %v340
    %v504 = vunpack.c.l.b16 %v341
    %v505 = vunpack.c.h.b16 %v341
    %v506 = vunpack.c.l.b16 %v342
    %v507 = vunpack.c.h.b16 %v342
    %v508 = vunpack.c.l.b16 %v343
    %v509 = vunpack.c.h.b16 %v343
    %v510 = vunpack.c.l.b16 %v344
    %v511 = vunpack.c.h.b16 %v344
    %v512 = vunpack.c.l.b16 %v345
    %v513 = vunpack.c.h.b16 %v345
    %v514 = vunpack.c.l.b16 %v346
    %v515 = vunpack.c.h.b16 %v346
    %v516 = vunpack.c.l.b16 %v347
    %v517 = vunpack.c.h.b16 %v347
    %v518 = vunpack.c.l.b16 %v348
    %v519 = vunpack.c.h.b16 %v348
    %v520 = vunpack.c.l.b16 %v349
    %v521 = vunpack.c.h.b16 %v349
    %v522 = vunpack.c.l.b16 %v350
    %v523 = vunpack.c.h.b16 %v350
    %v524 = vunpack.c.l.b16 %v351
    %v525 = vunpack.c.h.b16 %v351
    %v526 = vunpack.c.l.b16 %v352
    %v527 = vunpack.c.h.b16 %v352
    %v528 = vunpack.c.l.b16 %v353
    %v529 = vunpack.c.h.b16 %v353
    %v530 = vunpack.c.l.b16 %v354
    %v531 = vunpack.c.h.b16 %v354
    %v532 = vunpack.c.l.b16 %v355
    %v533 = vunpack.c.h.b16 %v355
    %v534 = vunpack.c.l.b16 %v356
    %v535 = vunpack.c.h.b16 %v356
    %v536 = vunpack.c.l.b16 %v357
    %v537 = vunpack.c.h.b16 %v357
    %v538 = vunpack.c.l.b16 %v358
    %v539 = vunpack.c.h.b16 %v358
    %v540 = vunpack.c.l.b16 %v359
    %v541 = vunpack.c.h.b16 %v359
    %v542 = vunpack.c.l.b16 %v360
    %v543 = vunpack.c.h.b16 %v360
    %v544 = vunpack.c.l.b16 %v361
    %v545 = vunpack.c.h.b16 %v361
    %v546 = vunpack.c.l.b16 %v362
    %v547 = vunpack.c.h.b16 %v362
    %v548 = vunpack.c.l.b16 %v363
    %v549 = vunpack.c.h.b16 %v363
    %v550 = vunpack.c.l.b16 %v364
    %v551 = vunpack.c.h.b16 %v364
    %v552 = vunpack.c.l.b16 %v365
    %v553 = vunpack.c.h.b16 %v365
    %v554 = vunpack.c.l.b16 %v366
    %v555 = vunpack.c.h.b16 %v366
    %v556 = vunpack.c.l.b16 %v367
    %v557 = vunpack.c.h.b16 %v367
    %v558 = vunpack.c.l.b16 %v368
    %v559 = vunpack.c.h.b16 %v368
    %v560 = vunpack.c.l.b16 %v369
    %v561 = vunpack.c.h.b16 %v369
    %v562 = vunpack.c.l.b16 %v370
    %v563 = vunpack.c.h.b16 %v370
    %v564 = vunpack.c.l.b16 %v371
    %v565 = vunpack.c.h.b16 %v371
    %v566 = vunpack.c.l.b16 %v372
    %v567 = vunpack.c.h.b16 %v372
    %v568 = vunpack.c.l.b16 %v373
    %v569 = vunpack.c.h.b16 %v373
    %v570 = vunpack.c.l.b16 %v374
    %v571 = vunpack.c.h.b16 %v374
    %v572 = vunpack.c.l.b16 %v375
    %v573 = vunpack.c.h.b16 %v375
    %v574 = vpack.c.b16 %v448, %v446
    %v575 = vpack.c.b16 %v449, %v447
    %v576 = vpack.c.b16 %v452, %v450
    %v577 = vpack.c.b16 %v453, %v451
    %v578 = vpack.c.b16 %v456, %v454
    %v579 = vpack.c.b16 %v457, %v455
    %v580 = vpack.c.b16 %v460, %v458
    %v581 = vpack.c.b16 %v461, %v459
    %v582 = vpack.c.b16 %v464, %v462
    %v583 = vpack.c.b16 %v465, %v463
    %v584 = vpack.c.b16 %v468, %v466
    %v585 = vpack.c.b16 %v469, %v467
    %v586 = vpack.c.b16 %v472, %v470
    %v587 = vpack.c.b16 %v473, %v471
    %v588 = vpack.c.b16 %v476, %v474
    %v589 = vpack.c.b16 %v477, %v475
    %v590 = vpack.c.b16 %v480, %v478
    %v591 = vpack.c.b16 %v481, %v479
    %v592 = vpack.c.b16 %v484, %v482
    %v593 = vpack.c.b16 %v485, %v483
    %v594 = vpack.c.b16 %v488, %v486
    %v595 = vpack.c.b16 %v489, %v487
    %v596 = vpack.c.b16 %v492, %v490
    %v597 = vpack.c.b16 %v493, %v491
    %v598 = vpack.c.b16 %v496, %v494
    %v599 = vpack.c.b16 %v497, %v495
    %v600 = vpack.c.b16 %v500, %v498
    %v601 = vpack.c.b16 %v501, %v499
    %v602 = vpack.c.b16 %v504, %v502
    %v603 = vpack.c.b16 %v505, %v503
    %v604 = vpack.c.b16 %v508, %v506
    %v605 = vpack.c.b16 %v509, %v507
    %v606 = vpack.c.b16 %v512, %v510
    %v607 = vpack.c.b16 %v513, %v511
    %v608 = vpack.c.b16 %v516, %v514
    %v609 = vpack.c.b16 %v517, %v515
    %v610 = vpack.c.b16 %v520, %v518
    %v611 = vpack.c.b16 %v521, %v519
    %v612 = vpack.c.b16 %v524, %v522
    %v613 = vpack.c.b16 %v525, %v523
    %v614 = vpack.c.b16 %v528, %v526
    %v615 = vpack.c.b16 %v529, %v527
    %v616 = vpack.c.b16 %v532, %v530
    %v617 = vpack.c.b16 %v533, %v531
    %v618 = vpack.c.b16 %v536, %v534
    %v619 = vpack.c.b16 %v537, %v535
    %v620 = vpack.c.b16 %v540, %v538
    %v621 = vpack.c.b16 %v541, %v539
    %v622 = vpack.c.b16 %v544, %v542
    %v623 = vpack.c.b16 %v545, %v543
    %v624 = vpack.c.b16 %v548, %v546
    %v625 = vpack.c.b16 %v549, %v547
    %v626 = vpack.c.b16 %v552, %v550
    %v627 = vpack.c.b16 %v553, %v551
    %v628 = vpack.c.b16 %v556, %v554
    %v629 = vpack.c.b16 %v557, %v555
    %v630 = vpack.c.b16 %v560, %v558
    %v631 = vpack.c.b16 %v561, %v559
    %v632 = vpack.c.b16 %v564, %v562
    %v633 = vpack.c.b16 %v565, %v563
    %v634 = vpack.c.b16 %v568, %v566
    %v635 = vpack.c.b16 %v569, %v567
    %v636 = vpack.c.b16 %v572, %v570
    %v637 = vpack.c.b16 %v573, %v571
    %702 = vmatpush.bf16.msra.mxu0 %v588
    %703 = vmatpush.bf16.msra.mxu0 %v586
    %704 = vmatpush.bf16.msra.mxu0 %v584
    %705 = vmatpush.bf16.msra.mxu0 %v582
    %706 = vmatpush.bf16.msra.mxu0 %v580
    %707 = vmatpush.bf16.msra.mxu0 %v578
    %708 = vmatpush.bf16.msra.mxu0 %v576
    %709 = vmatpush.bf16.msra.mxu0 %v574
    %710 = vmatmul.bf16.gmra.mxu0 %v296
    %v711 = vpop.f32.mrf.mxu0
    %v712 = vadd.f32 %v378, %v711
    %v713 = vpop.f32.mrf.mxu0
    %v714 = vadd.f32 %v378, %v713
    %715 = vmatmul.bf16.gmra.mxu0 %v300
    %v716 = vpop.f32.mrf.mxu0
    %v717 = vadd.f32 %v378, %v716
    %v718 = vpop.f32.mrf.mxu0
    %v719 = vadd.f32 %v378, %v718
    %720 = vmatmul.bf16.gmra.mxu0 %v304
    %v721 = vpop.f32.mrf.mxu0
    %v722 = vadd.f32 %v378, %v721
    %v723 = vpop.f32.mrf.mxu0
    %v724 = vadd.f32 %v378, %v723
    %725 = vmatmul.bf16.gmra.mxu0 %v308
    %v726 = vpop.f32.mrf.mxu0
    %v727 = vadd.f32 %v378, %v726
    %v728 = vpop.f32.mrf.mxu0
    %v729 = vadd.f32 %v378, %v728
    %730 = vdwg.mxu0
    %731 = vmatpush.bf16.msra.mxu0 %v604
    %732 = vmatpush.bf16.msra.mxu0 %v602
    %733 = vmatpush.bf16.msra.mxu0 %v600
    %734 = vmatpush.bf16.msra.mxu0 %v598
    %735 = vmatpush.bf16.msra.mxu0 %v596
    %736 = vmatpush.bf16.msra.mxu0 %v594
    %737 = vmatpush.bf16.msra.mxu0 %v592
    %738 = vmatpush.bf16.msra.mxu0 %v590
    %739 = vmatmul.bf16.gmra.mxu0 %v297
    %v740 = vpop.f32.mrf.mxu0
    %v741 = vadd.f32 %v712, %v740
    %v742 = vpop.f32.mrf.mxu0
    %v743 = vadd.f32 %v714, %v742
    %744 = vmatmul.bf16.gmra.mxu0 %v301
    %v745 = vpop.f32.mrf.mxu0
    %v746 = vadd.f32 %v717, %v745
    %v747 = vpop.f32.mrf.mxu0
    %v748 = vadd.f32 %v719, %v747
    %749 = vmatmul.bf16.gmra.mxu0 %v305
    %v750 = vpop.f32.mrf.mxu0
    %v751 = vadd.f32 %v722, %v750
    %v752 = vpop.f32.mrf.mxu0
    %v753 = vadd.f32 %v724, %v752
    %754 = vmatmul.bf16.gmra.mxu0 %v309
    %v755 = vpop.f32.mrf.mxu0
    %v756 = vadd.f32 %v727, %v755
    %v757 = vpop.f32.mrf.mxu0
    %v758 = vadd.f32 %v729, %v757
    %759 = vdwg.mxu0
    %760 = vmatpush.bf16.msra.mxu0 %v620
    %761 = vmatpush.bf16.msra.mxu0 %v618
    %762 = vmatpush.bf16.msra.mxu0 %v616
    %763 = vmatpush.bf16.msra.mxu0 %v614
    %764 = vmatpush.bf16.msra.mxu0 %v612
    %765 = vmatpush.bf16.msra.mxu0 %v610
    %766 = vmatpush.bf16.msra.mxu0 %v608
    %767 = vmatpush.bf16.msra.mxu0 %v606
    %768 = vmatmul.bf16.gmra.mxu0 %v298
    %v769 = vpop.f32.mrf.mxu0
    %v770 = vadd.f32 %v741, %v769
    %v771 = vpop.f32.mrf.mxu0
    %v772 = vadd.f32 %v743, %v771
    %773 = vmatmul.bf16.gmra.mxu0 %v302
    %v774 = vpop.f32.mrf.mxu0
    %v775 = vadd.f32 %v746, %v774
    %v776 = vpop.f32.mrf.mxu0
    %v777 = vadd.f32 %v748, %v776
    %778 = vmatmul.bf16.gmra.mxu0 %v306
    %v779 = vpop.f32.mrf.mxu0
    %v780 = vadd.f32 %v751, %v779
    %v781 = vpop.f32.mrf.mxu0
    %v782 = vadd.f32 %v753, %v781
    %783 = vmatmul.bf16.gmra.mxu0 %v310
    %v784 = vpop.f32.mrf.mxu0
    %v785 = vadd.f32 %v756, %v784
    %v786 = vpop.f32.mrf.mxu0
    %v787 = vadd.f32 %v758, %v786
    %788 = vdwg.mxu0
    %789 = vmatpush.bf16.msra.mxu0 %v636
    %790 = vmatpush.bf16.msra.mxu0 %v634
    %791 = vmatpush.bf16.msra.mxu0 %v632
    %792 = vmatpush.bf16.msra.mxu0 %v630
    %793 = vmatpush.bf16.msra.mxu0 %v628
    %794 = vmatpush.bf16.msra.mxu0 %v626
    %795 = vmatpush.bf16.msra.mxu0 %v624
    %796 = vmatpush.bf16.msra.mxu0 %v622
    %797 = vmatmul.bf16.gmra.mxu0 %v299
    %v798 = vpop.f32.mrf.mxu0
    %v799 = vadd.f32 %v770, %v798
    %v800 = vpop.f32.mrf.mxu0
    %v801 = vadd.f32 %v772, %v800
    %802 = vmatmul.bf16.gmra.mxu0 %v303
    %v803 = vpop.f32.mrf.mxu0
    %v804 = vadd.f32 %v775, %v803
    %v805 = vpop.f32.mrf.mxu0
    %v806 = vadd.f32 %v777, %v805
    %807 = vmatmul.bf16.gmra.mxu0 %v307
    %v808 = vpop.f32.mrf.mxu0
    %v809 = vadd.f32 %v780, %v808
    %v810 = vpop.f32.mrf.mxu0
    %v811 = vadd.f32 %v782, %v810
    %812 = vmatmul.bf16.gmra.mxu0 %v311
    %v813 = vpop.f32.mrf.mxu0
    %v814 = vadd.f32 %v785, %v813
    %v815 = vpop.f32.mrf.mxu0
    %v816 = vadd.f32 %v787, %v815
    %817 = vdwg.mxu0
    %818 = vmatpush.bf16.msra.mxu0 %v589
    %819 = vmatpush.bf16.msra.mxu0 %v587
    %820 = vmatpush.bf16.msra.mxu0 %v585
    %821 = vmatpush.bf16.msra.mxu0 %v583
    %822 = vmatpush.bf16.msra.mxu0 %v581
    %823 = vmatpush.bf16.msra.mxu0 %v579
    %824 = vmatpush.bf16.msra.mxu0 %v577
    %825 = vmatpush.bf16.msra.mxu0 %v575
    %826 = vmatmul.bf16.gmra.mxu0 %v296
    %v827 = vpop.f32.mrf.mxu0
    %v828 = vadd.f32 %v379, %v827
    %v829 = vpop.f32.mrf.mxu0
    %v830 = vadd.f32 %v379, %v829
    %831 = vmatmul.bf16.gmra.mxu0 %v300
    %v832 = vpop.f32.mrf.mxu0
    %v833 = vadd.f32 %v379, %v832
    %v834 = vpop.f32.mrf.mxu0
    %v835 = vadd.f32 %v379, %v834
    %836 = vmatmul.bf16.gmra.mxu0 %v304
    %v837 = vpop.f32.mrf.mxu0
    %v838 = vadd.f32 %v379, %v837
    %v839 = vpop.f32.mrf.mxu0
    %v840 = vadd.f32 %v379, %v839
    %841 = vmatmul.bf16.gmra.mxu0 %v308
    %v842 = vpop.f32.mrf.mxu0
    %v843 = vadd.f32 %v379, %v842
    %v844 = vpop.f32.mrf.mxu0
    %v845 = vadd.f32 %v379, %v844
    %846 = vdwg.mxu0
    %847 = vmatpush.bf16.msra.mxu0 %v605
    %848 = vmatpush.bf16.msra.mxu0 %v603
    %849 = vmatpush.bf16.msra.mxu0 %v601
    %850 = vmatpush.bf16.msra.mxu0 %v599
    %851 = vmatpush.bf16.msra.mxu0 %v597
    %852 = vmatpush.bf16.msra.mxu0 %v595
    %853 = vmatpush.bf16.msra.mxu0 %v593
    %854 = vmatpush.bf16.msra.mxu0 %v591
    %855 = vmatmul.bf16.gmra.mxu0 %v297
    %v856 = vpop.f32.mrf.mxu0
    %v857 = vadd.f32 %v828, %v856
    %v858 = vpop.f32.mrf.mxu0
    %v859 = vadd.f32 %v830, %v858
    %860 = vmatmul.bf16.gmra.mxu0 %v301
    %v861 = vpop.f32.mrf.mxu0
    %v862 = vadd.f32 %v833, %v861
    %v863 = vpop.f32.mrf.mxu0
    %v864 = vadd.f32 %v835, %v863
    %865 = vmatmul.bf16.gmra.mxu0 %v305
    %v866 = vpop.f32.mrf.mxu0
    %v867 = vadd.f32 %v838, %v866
    %v868 = vpop.f32.mrf.mxu0
    %v869 = vadd.f32 %v840, %v868
    %870 = vmatmul.bf16.gmra.mxu0 %v309
    %v871 = vpop.f32.mrf.mxu0
    %v872 = vadd.f32 %v843, %v871
    %v873 = vpop.f32.mrf.mxu0
    %v874 = vadd.f32 %v845, %v873
    %875 = vdwg.mxu0
    %876 = vmatpush.bf16.msra.mxu0 %v621
    %877 = vmatpush.bf16.msra.mxu0 %v619
    %878 = vmatpush.bf16.msra.mxu0 %v617
    %879 = vmatpush.bf16.msra.mxu0 %v615
    %880 = vmatpush.bf16.msra.mxu0 %v613
    %881 = vmatpush.bf16.msra.mxu0 %v611
    %882 = vmatpush.bf16.msra.mxu0 %v609
    %883 = vmatpush.bf16.msra.mxu0 %v607
    %884 = vmatmul.bf16.gmra.mxu0 %v298
    %v885 = vpop.f32.mrf.mxu0
    %v886 = vadd.f32 %v857, %v885
    %v887 = vpop.f32.mrf.mxu0
    %v888 = vadd.f32 %v859, %v887
    %889 = vmatmul.bf16.gmra.mxu0 %v302
    %v890 = vpop.f32.mrf.mxu0
    %v891 = vadd.f32 %v862, %v890
    %v892 = vpop.f32.mrf.mxu0
    %v893 = vadd.f32 %v864, %v892
    %894 = vmatmul.bf16.gmra.mxu0 %v306
    %v895 = vpop.f32.mrf.mxu0
    %v896 = vadd.f32 %v867, %v895
    %v897 = vpop.f32.mrf.mxu0
    %v898 = vadd.f32 %v869, %v897
    %899 = vmatmul.bf16.gmra.mxu0 %v310
    %v900 = vpop.f32.mrf.mxu0
    %v901 = vadd.f32 %v872, %v900
    %v902 = vpop.f32.mrf.mxu0
    %v903 = vadd.f32 %v874, %v902
    %904 = vdwg.mxu0
    %905 = vmatpush.bf16.msra.mxu0 %v637
    %906 = vmatpush.bf16.msra.mxu0 %v635
    %907 = vmatpush.bf16.msra.mxu0 %v633
    %908 = vmatpush.bf16.msra.mxu0 %v631
    %909 = vmatpush.bf16.msra.mxu0 %v629
    %910 = vmatpush.bf16.msra.mxu0 %v627
    %911 = vmatpush.bf16.msra.mxu0 %v625
    %912 = vmatpush.bf16.msra.mxu0 %v623
    %913 = vmatmul.bf16.gmra.mxu0 %v299
    %v914 = vpop.f32.mrf.mxu0
    %v915 = vadd.f32 %v886, %v914
    %v916 = vpop.f32.mrf.mxu0
    %v917 = vadd.f32 %v888, %v916
    %918 = vmatmul.bf16.gmra.mxu0 %v303
    %v919 = vpop.f32.mrf.mxu0
    %v920 = vadd.f32 %v891, %v919
    %v921 = vpop.f32.mrf.mxu0
    %v922 = vadd.f32 %v893, %v921
    %923 = vmatmul.bf16.gmra.mxu0 %v307
    %v924 = vpop.f32.mrf.mxu0
    %v925 = vadd.f32 %v896, %v924
    %v926 = vpop.f32.mrf.mxu0
    %v927 = vadd.f32 %v898, %v926
    %928 = vmatmul.bf16.gmra.mxu0 %v311
    %v929 = vpop.f32.mrf.mxu0
    %v930 = vadd.f32 %v901, %v929
    %v931 = vpop.f32.mrf.mxu0
    %v932 = vadd.f32 %v903, %v931
    %933 = vdwg.mxu0
    %v934 = vtanh.pop %v799
    %v935 = vtanh.pop %v915
    %v936 = vtanh.pop %v801
    %v937 = vtanh.pop %v917
    %v938 = vtanh.pop %v804
    %v939 = vtanh.pop %v920
    %v940 = vtanh.pop %v806
    %v941 = vtanh.pop %v922
    %v942 = vtanh.pop %v809
    %v943 = vtanh.pop %v925
    %v944 = vtanh.pop %v811
    %v945 = vtanh.pop %v927
    %v946 = vtanh.pop %v814
    %v947 = vtanh.pop %v930
    %v948 = vtanh.pop %v816
    %v949 = vtanh.pop %v932
    %v950 = vpack.c.bf16 %v936, %v934
    %v951 = vpack.c.bf16 %v937, %v935
    %v952 = vpack.c.bf16 %v940, %v938
    %v953 = vpack.c.bf16 %v941, %v939
    %v954 = vpack.c.bf16 %v944, %v942
    %v955 = vpack.c.bf16 %v945, %v943
    %v956 = vpack.c.bf16 %v948, %v946
    %v957 = vpack.c.bf16 %v949, %v947
    %v958 = vld [vmem:[#allocation2] sm:$0xff]
    %v959 = vld [vmem:[#allocation2 + $0x8] sm:$0xff]
    %v960 = vld [vmem:[#allocation2 + $0x10] sm:$0xff]
    %v961 = vld [vmem:[#allocation2 + $0x18] sm:$0xff]
    %v962 = vld [vmem:[#allocation2 + $0x20] sm:$0xff]
    %v963 = vld [vmem:[#allocation2 + $0x28] sm:$0xff]
    %v964 = vld [vmem:[#allocation2 + $0x30] sm:$0xff]
    %v965 = vld [vmem:[#allocation2 + $0x38] sm:$0xff]
    %v966 = vld [vmem:[#allocation2 + $0x40] sm:$0xff]
    %v967 = vld [vmem:[#allocation2 + $0x48] sm:$0xff]
    %v968 = vld [vmem:[#allocation2 + $0x50] sm:$0xff]
    %v969 = vld [vmem:[#allocation2 + $0x58] sm:$0xff]
    %v970 = vld [vmem:[#allocation2 + $0x60] sm:$0xff]
    %v971 = vld [vmem:[#allocation2 + $0x68] sm:$0xff]
    %v972 = vld [vmem:[#allocation2 + $0x70] sm:$0xff]
    %v973 = vld [vmem:[#allocation2 + $0x78] sm:$0xff]
    %v974 = vld [vmem:[#allocation2 + $0x80] sm:$0xff]
    %v975 = vld [vmem:[#allocation2 + $0x88] sm:$0xff]
    %v976 = vld [vmem:[#allocation2 + $0x90] sm:$0xff]
    %v977 = vld [vmem:[#allocation2 + $0x98] sm:$0xff]
    %v978 = vld [vmem:[#allocation2 + $0xa0] sm:$0xff]
    %v979 = vld [vmem:[#allocation2 + $0xa8] sm:$0xff]
    %v980 = vld [vmem:[#allocation2 + $0xb0] sm:$0xff]
    %v981 = vld [vmem:[#allocation2 + $0xb8] sm:$0xff]
    %v982 = vld [vmem:[#allocation2 + $0xc0] sm:$0xff]
    %v983 = vld [vmem:[#allocation2 + $0xc8] sm:$0xff]
    %v984 = vld [vmem:[#allocation2 + $0xd0] sm:$0xff]
    %v985 = vld [vmem:[#allocation2 + $0xd8] sm:$0xff]
    %v986 = vld [vmem:[#allocation2 + $0xe0] sm:$0xff]
    %v987 = vld [vmem:[#allocation2 + $0xe8] sm:$0xff]
    %v988 = vld [vmem:[#allocation2 + $0xf0] sm:$0xff]
    %v989 = vld [vmem:[#allocation2 + $0xf8] sm:$0xff]
    %v990 = vld [vmem:[%s6] sm:$0x3]
    %v992 = vperm.slane %v990, 0
    %v993 = vperm.slane %v990, 1
    %v1028 = vunpack.c.l.b16 %v958
    %v1029 = vunpack.c.h.b16 %v958
    %v1030 = vunpack.c.l.b16 %v959
    %v1031 = vunpack.c.h.b16 %v959
    %v1032 = vunpack.c.l.b16 %v960
    %v1033 = vunpack.c.h.b16 %v960
    %v1034 = vunpack.c.l.b16 %v961
    %v1035 = vunpack.c.h.b16 %v961
    %v1036 = vunpack.c.l.b16 %v962
    %v1037 = vunpack.c.h.b16 %v962
    %v1038 = vunpack.c.l.b16 %v963
    %v1039 = vunpack.c.h.b16 %v963
    %v1040 = vunpack.c.l.b16 %v964
    %v1041 = vunpack.c.h.b16 %v964
    %v1042 = vunpack.c.l.b16 %v965
    %v1043 = vunpack.c.h.b16 %v965
    %v1044 = vunpack.c.l.b16 %v966
    %v1045 = vunpack.c.h.b16 %v966
    %v1046 = vunpack.c.l.b16 %v967
    %v1047 = vunpack.c.h.b16 %v967
    %v1048 = vunpack.c.l.b16 %v968
    %v1049 = vunpack.c.h.b16 %v968
    %v1050 = vunpack.c.l.b16 %v969
    %v1051 = vunpack.c.h.b16 %v969
    %v1052 = vunpack.c.l.b16 %v970
    %v1053 = vunpack.c.h.b16 %v970
    %v1054 = vunpack.c.l.b16 %v971
    %v1055 = vunpack.c.h.b16 %v971
    %v1056 = vunpack.c.l.b16 %v972
    %v1057 = vunpack.c.h.b16 %v972
    %v1058 = vunpack.c.l.b16 %v973
    %v1059 = vunpack.c.h.b16 %v973
    %v1060 = vunpack.c.l.b16 %v974
    %v1061 = vunpack.c.h.b16 %v974
    %v1062 = vunpack.c.l.b16 %v975
    %v1063 = vunpack.c.h.b16 %v975
    %v1064 = vunpack.c.l.b16 %v976
    %v1065 = vunpack.c.h.b16 %v976
    %v1066 = vunpack.c.l.b16 %v977
    %v1067 = vunpack.c.h.b16 %v977
    %v1068 = vunpack.c.l.b16 %v978
    %v1069 = vunpack.c.h.b16 %v978
    %v1070 = vunpack.c.l.b16 %v979
    %v1071 = vunpack.c.h.b16 %v979
    %v1072 = vunpack.c.l.b16 %v980
    %v1073 = vunpack.c.h.b16 %v980
    %v1074 = vunpack.c.l.b16 %v981
    %v1075 = vunpack.c.h.b16 %v981
    %v1076 = vunpack.c.l.b16 %v982
    %v1077 = vunpack.c.h.b16 %v982
    %v1078 = vunpack.c.l.b16 %v983
    %v1079 = vunpack.c.h.b16 %v983
    %v1080 = vunpack.c.l.b16 %v984
    %v1081 = vunpack.c.h.b16 %v984
    %v1082 = vunpack.c.l.b16 %v985
    %v1083 = vunpack.c.h.b16 %v985
    %v1084 = vunpack.c.l.b16 %v986
    %v1085 = vunpack.c.h.b16 %v986
    %v1086 = vunpack.c.l.b16 %v987
    %v1087 = vunpack.c.h.b16 %v987
    %v1088 = vunpack.c.l.b16 %v988
    %v1089 = vunpack.c.h.b16 %v988
    %v1090 = vunpack.c.l.b16 %v989
    %v1091 = vunpack.c.h.b16 %v989
    %v1092 = vpack.c.b16 %v1030, %v1028
    %v1093 = vpack.c.b16 %v1031, %v1029
    %v1094 = vpack.c.b16 %v1034, %v1032
    %v1095 = vpack.c.b16 %v1035, %v1033
    %v1096 = vpack.c.b16 %v1038, %v1036
    %v1097 = vpack.c.b16 %v1039, %v1037
    %v1098 = vpack.c.b16 %v1042, %v1040
    %v1099 = vpack.c.b16 %v1043, %v1041
    %v1100 = vpack.c.b16 %v1046, %v1044
    %v1101 = vpack.c.b16 %v1047, %v1045
    %v1102 = vpack.c.b16 %v1050, %v1048
    %v1103 = vpack.c.b16 %v1051, %v1049
    %v1104 = vpack.c.b16 %v1054, %v1052
    %v1105 = vpack.c.b16 %v1055, %v1053
    %v1106 = vpack.c.b16 %v1058, %v1056
    %v1107 = vpack.c.b16 %v1059, %v1057
    %v1108 = vpack.c.b16 %v1062, %v1060
    %v1109 = vpack.c.b16 %v1063, %v1061
    %v1110 = vpack.c.b16 %v1066, %v1064
    %v1111 = vpack.c.b16 %v1067, %v1065
    %v1112 = vpack.c.b16 %v1070, %v1068
    %v1113 = vpack.c.b16 %v1071, %v1069
    %v1114 = vpack.c.b16 %v1074, %v1072
    %v1115 = vpack.c.b16 %v1075, %v1073
    %v1116 = vpack.c.b16 %v1078, %v1076
    %v1117 = vpack.c.b16 %v1079, %v1077
    %v1118 = vpack.c.b16 %v1082, %v1080
    %v1119 = vpack.c.b16 %v1083, %v1081
    %v1120 = vpack.c.b16 %v1086, %v1084
    %v1121 = vpack.c.b16 %v1087, %v1085
    %v1122 = vpack.c.b16 %v1090, %v1088
    %v1123 = vpack.c.b16 %v1091, %v1089
    %1156 = vmatpush.bf16.msra.mxu0 %v1106
    %1157 = vmatpush.bf16.msra.mxu0 %v1104
    %1158 = vmatpush.bf16.msra.mxu0 %v1102
    %1159 = vmatpush.bf16.msra.mxu0 %v1100
    %1160 = vmatpush.bf16.msra.mxu0 %v1098
    %1161 = vmatpush.bf16.msra.mxu0 %v1096
    %1162 = vmatpush.bf16.msra.mxu0 %v1094
    %1163 = vmatpush.bf16.msra.mxu0 %v1092
    %1164 = vmatmul.bf16.gmra.mxu0 %v950
    %v1165 = vpop.f32.mrf.mxu0
    %v1166 = vadd.f32 %v992, %v1165
    %v1167 = vpop.f32.mrf.mxu0
    %v1168 = vadd.f32 %v992, %v1167
    %1169 = vmatmul.bf16.gmra.mxu0 %v952
    %v1170 = vpop.f32.mrf.mxu0
    %v1171 = vadd.f32 %v992, %v1170
    %v1172 = vpop.f32.mrf.mxu0
    %v1173 = vadd.f32 %v992, %v1172
    %1174 = vmatmul.bf16.gmra.mxu0 %v954
    %v1175 = vpop.f32.mrf.mxu0
    %v1176 = vadd.f32 %v992, %v1175
    %v1177 = vpop.f32.mrf.mxu0
    %v1178 = vadd.f32 %v992, %v1177
    %1179 = vmatmul.bf16.gmra.mxu0 %v956
    %v1180 = vpop.f32.mrf.mxu0
    %v1181 = vadd.f32 %v992, %v1180
    %v1182 = vpop.f32.mrf.mxu0
    %v1183 = vadd.f32 %v992, %v1182
    %1184 = vdwg.mxu0
    %1185 = vmatpush.bf16.msra.mxu0 %v1122
    %1186 = vmatpush.bf16.msra.mxu0 %v1120
    %1187 = vmatpush.bf16.msra.mxu0 %v1118
    %1188 = vmatpush.bf16.msra.mxu0 %v1116
    %1189 = vmatpush.bf16.msra.mxu0 %v1114
    %1190 = vmatpush.bf16.msra.mxu0 %v1112
    %1191 = vmatpush.bf16.msra.mxu0 %v1110
    %1192 = vmatpush.bf16.msra.mxu0 %v1108
    %1193 = vmatmul.bf16.gmra.mxu0 %v951
    %v1194 = vpop.f32.mrf.mxu0
    %v1195 = vadd.f32 %v1166, %v1194
    %v1196 = vpop.f32.mrf.mxu0
    %v1197 = vadd.f32 %v1168, %v1196
    %1198 = vmatmul.bf16.gmra.mxu0 %v953
    %v1199 = vpop.f32.mrf.mxu0
    %v1200 = vadd.f32 %v1171, %v1199
    %v1201 = vpop.f32.mrf.mxu0
    %v1202 = vadd.f32 %v1173, %v1201
    %1203 = vmatmul.bf16.gmra.mxu0 %v955
    %v1204 = vpop.f32.mrf.mxu0
    %v1205 = vadd.f32 %v1176, %v1204
    %v1206 = vpop.f32.mrf.mxu0
    %v1207 = vadd.f32 %v1178, %v1206
    %1208 = vmatmul.bf16.gmra.mxu0 %v957
    %v1209 = vpop.f32.mrf.mxu0
    %v1210 = vadd.f32 %v1181, %v1209
    %v1211 = vpop.f32.mrf.mxu0
    %v1212 = vadd.f32 %v1183, %v1211
    %1213 = vdwg.mxu0
    %1214 = vmatpush.bf16.msra.mxu0 %v1107
    %1215 = vmatpush.bf16.msra.mxu0 %v1105
    %1216 = vmatpush.bf16.msra.mxu0 %v1103
    %1217 = vmatpush.bf16.msra.mxu0 %v1101
    %1218 = vmatpush.bf16.msra.mxu0 %v1099
    %1219 = vmatpush.bf16.msra.mxu0 %v1097
    %1220 = vmatpush.bf16.msra.mxu0 %v1095
    %1221 = vmatpush.bf16.msra.mxu0 %v1093
    %1222 = vmatmul.bf16.gmra.mxu0 %v950
    %v1223 = vpop.f32.mrf.mxu0
    %v1224 = vadd.f32 %v993, %v1223
    %v1225 = vpop.f32.mrf.mxu0
    %v1226 = vadd.f32 %v993, %v1225
    %1227 = vmatmul.bf16.gmra.mxu0 %v952
    %v1228 = vpop.f32.mrf.mxu0
    %v1229 = vadd.f32 %v993, %v1228
    %v1230 = vpop.f32.mrf.mxu0
    %v1231 = vadd.f32 %v993, %v1230
    %1232 = vmatmul.bf16.gmra.mxu0 %v954
    %v1233 = vpop.f32.mrf.mxu0
    %v1234 = vadd.f32 %v993, %v1233
    %v1235 = vpop.f32.mrf.mxu0
    %v1236 = vadd.f32 %v993, %v1235
    %1237 = vmatmul.bf16.gmra.mxu0 %v956
    %v1238 = vpop.f32.mrf.mxu0
    %v1239 = vadd.f32 %v993, %v1238
    %v1240 = vpop.f32.mrf.mxu0
    %v1241 = vadd.f32 %v993, %v1240
    %1242 = vdwg.mxu0
    %1243 = vmatpush.bf16.msra.mxu0 %v1123
    %1244 = vmatpush.bf16.msra.mxu0 %v1121
    %1245 = vmatpush.bf16.msra.mxu0 %v1119
    %1246 = vmatpush.bf16.msra.mxu0 %v1117
    %1247 = vmatpush.bf16.msra.mxu0 %v1115
    %1248 = vmatpush.bf16.msra.mxu0 %v1113
    %1249 = vmatpush.bf16.msra.mxu0 %v1111
    %1250 = vmatpush.bf16.msra.mxu0 %v1109
    %1251 = vmatmul.bf16.gmra.mxu0 %v951
    %v1252 = vpop.f32.mrf.mxu0
    %v1253 = vadd.f32 %v1224, %v1252
    %v1254 = vpop.f32.mrf.mxu0
    %v1255 = vadd.f32 %v1226, %v1254
    %1256 = vmatmul.bf16.gmra.mxu0 %v953
    %v1257 = vpop.f32.mrf.mxu0
    %v1258 = vadd.f32 %v1229, %v1257
    %v1259 = vpop.f32.mrf.mxu0
    %v1260 = vadd.f32 %v1231, %v1259
    %1261 = vmatmul.bf16.gmra.mxu0 %v955
    %v1262 = vpop.f32.mrf.mxu0
    %v1263 = vadd.f32 %v1234, %v1262
    %v1264 = vpop.f32.mrf.mxu0
    %v1265 = vadd.f32 %v1236, %v1264
    %1266 = vmatmul.bf16.gmra.mxu0 %v957
    %v1267 = vpop.f32.mrf.mxu0
    %v1268 = vadd.f32 %v1239, %v1267
    %v1269 = vpop.f32.mrf.mxu0
    %v1270 = vadd.f32 %v1241, %v1269
    %1271 = vdwg.mxu0
    %v1272 = vtanh.pop %v1195
    %v1273 = vtanh.pop %v1253
    %v1274 = vtanh.pop %v1197
    %v1275 = vtanh.pop %v1255
    %v1276 = vtanh.pop %v1200
    %v1277 = vtanh.pop %v1258
    %v1278 = vtanh.pop %v1202
    %v1279 = vtanh.pop %v1260
    %v1280 = vtanh.pop %v1205
    %v1281 = vtanh.pop %v1263
    %v1282 = vtanh.pop %v1207
    %v1283 = vtanh.pop %v1265
    %v1284 = vtanh.pop %v1210
    %v1285 = vtanh.pop %v1268
    %v1286 = vtanh.pop %v1212
    %v1287 = vtanh.pop %v1270
    %v1288 = vpack.c.bf16 %v1274, %v1272
    %v1289 = vpack.c.bf16 %v1275, %v1273
    %v1290 = vpack.c.bf16 %v1278, %v1276
    %v1291 = vpack.c.bf16 %v1279, %v1277
    %v1292 = vpack.c.bf16 %v1282, %v1280
    %v1293 = vpack.c.bf16 %v1283, %v1281
    %v1294 = vpack.c.bf16 %v1286, %v1284
    %v1295 = vpack.c.bf16 %v1287, %v1285
    %v1296 = vld [vmem:[%s7] sm:$0xf]
    %v1297 = vld [vmem:[%s7 + $0x4] sm:$0xf]
    %v1298 = vld [vmem:[%s7 + $0x8] sm:$0xf]
    %v1299 = vld [vmem:[%s7 + $0xc] sm:$0xf]
    %v1300 = vld [vmem:[%s7 + $0x10] sm:$0xf]
    %v1301 = vld [vmem:[%s7 + $0x14] sm:$0xf]
    %v1302 = vld [vmem:[%s7 + $0x18] sm:$0xf]
    %v1303 = vld [vmem:[%s7 + $0x1c] sm:$0xf]
    %v1304 = vld [vmem:[%s7 + $0x20] sm:$0xf]
    %v1305 = vld [vmem:[%s7 + $0x24] sm:$0xf]
    %v1306 = vld [vmem:[%s7 + $0x28] sm:$0xf]
    %v1307 = vld [vmem:[%s7 + $0x2c] sm:$0xf]
    %v1308 = vld [vmem:[%s7 + $0x30] sm:$0xf]
    %v1309 = vld [vmem:[%s7 + $0x34] sm:$0xf]
    %v1310 = vld [vmem:[%s7 + $0x38] sm:$0xf]
    %v1311 = vld [vmem:[%s7 + $0x3c] sm:$0xf]
    %v1312 = vld [vmem:[%s7 + $0x40] sm:$0xf]
    %v1313 = vld [vmem:[%s7 + $0x44] sm:$0xf]
    %v1314 = vld [vmem:[%s7 + $0x48] sm:$0xf]
    %v1315 = vld [vmem:[%s7 + $0x4c] sm:$0xf]
    %v1316 = vld [vmem:[%s7 + $0x50] sm:$0xf]
    %v1317 = vld [vmem:[%s7 + $0x54] sm:$0xf]
    %v1318 = vld [vmem:[%s7 + $0x58] sm:$0xf]
    %v1319 = vld [vmem:[%s7 + $0x5c] sm:$0xf]
    %v1320 = vld [vmem:[%s7 + $0x60] sm:$0xf]
    %v1321 = vld [vmem:[%s7 + $0x64] sm:$0xf]
    %v1322 = vld [vmem:[%s7 + $0x68] sm:$0xf]
    %v1323 = vld [vmem:[%s7 + $0x6c] sm:$0xf]
    %v1324 = vld [vmem:[%s7 + $0x70] sm:$0xf]
    %v1325 = vld [vmem:[%s7 + $0x74] sm:$0xf]
    %v1326 = vld [vmem:[%s7 + $0x78] sm:$0xf]
    %v1327 = vld [vmem:[%s7 + $0x7c] sm:$0xf]
    %v1328 = vld [vmem:[%s8] sm:$0x1]
    %v1330 = vperm.slane %v1328, 0
    %v1364 = vunpack.c.l.b16 %v1296
    %v1365 = vunpack.c.l.b16 %v1297
    %v1366 = vunpack.c.l.b16 %v1298
    %v1367 = vunpack.c.l.b16 %v1299
    %v1368 = vunpack.c.l.b16 %v1300
    %v1369 = vunpack.c.l.b16 %v1301
    %v1370 = vunpack.c.l.b16 %v1302
    %v1371 = vunpack.c.l.b16 %v1303
    %v1372 = vunpack.c.l.b16 %v1304
    %v1373 = vunpack.c.l.b16 %v1305
    %v1374 = vunpack.c.l.b16 %v1306
    %v1375 = vunpack.c.l.b16 %v1307
    %v1376 = vunpack.c.l.b16 %v1308
    %v1377 = vunpack.c.l.b16 %v1309
    %v1378 = vunpack.c.l.b16 %v1310
    %v1379 = vunpack.c.l.b16 %v1311
    %v1380 = vunpack.c.l.b16 %v1312
    %v1381 = vunpack.c.l.b16 %v1313
    %v1382 = vunpack.c.l.b16 %v1314
    %v1383 = vunpack.c.l.b16 %v1315
    %v1384 = vunpack.c.l.b16 %v1316
    %v1385 = vunpack.c.l.b16 %v1317
    %v1386 = vunpack.c.l.b16 %v1318
    %v1387 = vunpack.c.l.b16 %v1319
    %v1388 = vunpack.c.l.b16 %v1320
    %v1389 = vunpack.c.l.b16 %v1321
    %v1390 = vunpack.c.l.b16 %v1322
    %v1391 = vunpack.c.l.b16 %v1323
    %v1392 = vunpack.c.l.b16 %v1324
    %v1393 = vunpack.c.l.b16 %v1325
    %v1394 = vunpack.c.l.b16 %v1326
    %v1395 = vunpack.c.l.b16 %v1327
    %v1396 = vpack.c.b16 %v1365, %v1364
    %v1397 = vpack.c.b16 %v1367, %v1366
    %v1398 = vpack.c.b16 %v1369, %v1368
    %v1399 = vpack.c.b16 %v1371, %v1370
    %v1400 = vpack.c.b16 %v1373, %v1372
    %v1401 = vpack.c.b16 %v1375, %v1374
    %v1402 = vpack.c.b16 %v1377, %v1376
    %v1403 = vpack.c.b16 %v1379, %v1378
    %v1404 = vpack.c.b16 %v1381, %v1380
    %v1405 = vpack.c.b16 %v1383, %v1382
    %v1406 = vpack.c.b16 %v1385, %v1384
    %v1407 = vpack.c.b16 %v1387, %v1386
    %v1408 = vpack.c.b16 %v1389, %v1388
    %v1409 = vpack.c.b16 %v1391, %v1390
    %v1410 = vpack.c.b16 %v1393, %v1392
    %v1411 = vpack.c.b16 %v1395, %v1394
    %1428 = vmatpush.bf16.msra.mxu0 %v1403
    %1429 = vmatpush.bf16.msra.mxu0 %v1402
    %1430 = vmatpush.bf16.msra.mxu0 %v1401
    %1431 = vmatpush.bf16.msra.mxu0 %v1400
    %1432 = vmatpush.bf16.msra.mxu0 %v1399
    %1433 = vmatpush.bf16.msra.mxu0 %v1398
    %1434 = vmatpush.bf16.msra.mxu0 %v1397
    %1435 = vmatpush.bf16.msra.mxu0 %v1396
    %1436 = vmatmul.bf16.gmra.mxu0 %v1288
    %v1437 = vpop.f32.mrf.mxu0
    %v1438 = vadd.f32 %v1330, %v1437
    %v1439 = vpop.f32.mrf.mxu0
    %v1440 = vadd.f32 %v1330, %v1439
    %1441 = vmatmul.bf16.gmra.mxu0 %v1290
    %v1442 = vpop.f32.mrf.mxu0
    %v1443 = vadd.f32 %v1330, %v1442
    %v1444 = vpop.f32.mrf.mxu0
    %v1445 = vadd.f32 %v1330, %v1444
    %1446 = vmatmul.bf16.gmra.mxu0 %v1292
    %v1447 = vpop.f32.mrf.mxu0
    %v1448 = vadd.f32 %v1330, %v1447
    %v1449 = vpop.f32.mrf.mxu0
    %v1450 = vadd.f32 %v1330, %v1449
    %1451 = vmatmul.bf16.gmra.mxu0 %v1294
    %v1452 = vpop.f32.mrf.mxu0
    %v1453 = vadd.f32 %v1330, %v1452
    %v1454 = vpop.f32.mrf.mxu0
    %v1455 = vadd.f32 %v1330, %v1454
    %1456 = vdwg.mxu0
    %1457 = vmatpush.bf16.msra.mxu0 %v1411
    %1458 = vmatpush.bf16.msra.mxu0 %v1410
    %1459 = vmatpush.bf16.msra.mxu0 %v1409
    %1460 = vmatpush.bf16.msra.mxu0 %v1408
    %1461 = vmatpush.bf16.msra.mxu0 %v1407
    %1462 = vmatpush.bf16.msra.mxu0 %v1406
    %1463 = vmatpush.bf16.msra.mxu0 %v1405
    %1464 = vmatpush.bf16.msra.mxu0 %v1404
    %1465 = vmatmul.bf16.gmra.mxu0 %v1289
    %v1466 = vpop.f32.mrf.mxu0
    %v1467 = vadd.f32 %v1438, %v1466
    %v1468 = vpop.f32.mrf.mxu0
    %v1469 = vadd.f32 %v1440, %v1468
    %1470 = vmatmul.bf16.gmra.mxu0 %v1291
    %v1471 = vpop.f32.mrf.mxu0
    %v1472 = vadd.f32 %v1443, %v1471
    %v1473 = vpop.f32.mrf.mxu0
    %v1474 = vadd.f32 %v1445, %v1473
    %1475 = vmatmul.bf16.gmra.mxu0 %v1293
    %v1476 = vpop.f32.mrf.mxu0
    %v1477 = vadd.f32 %v1448, %v1476
    %v1478 = vpop.f32.mrf.mxu0
    %v1479 = vadd.f32 %v1450, %v1478
    %1480 = vmatmul.bf16.gmra.mxu0 %v1295
    %v1481 = vpop.f32.mrf.mxu0
    %v1482 = vadd.f32 %v1453, %v1481
    %v1483 = vpop.f32.mrf.mxu0
    %v1484 = vadd.f32 %v1455, %v1483
    %1485 = vdwg.mxu0
    %1486 = vmax.xlane.f32.xlu0 %v1467
    %v1487 = vpop.xlane.xlu0 %1486
    %1488 = vmax.xlane.f32.xlu0 %v1469
    %v1489 = vpop.xlane.xlu0 %1488
    %1490 = vmax.xlane.f32.xlu0 %v1472
    %v1491 = vpop.xlane.xlu0 %1490
    %1492 = vmax.xlane.f32.xlu0 %v1474
    %v1493 = vpop.xlane.xlu0 %1492
    %1494 = vmax.xlane.f32.xlu0 %v1477
    %v1495 = vpop.xlane.xlu0 %1494
    %1496 = vmax.xlane.f32.xlu0 %v1479
    %v1497 = vpop.xlane.xlu0 %1496
    %1498 = vmax.xlane.f32.xlu0 %v1482
    %v1499 = vpop.xlane.xlu0 %1498
    %1500 = vmax.xlane.f32.xlu0 %v1484
    %v1501 = vpop.xlane.xlu0 %1500
    %v1502 = vsub.f32 %v1467, %v1487
    %v1503 = vsub.f32 %v1469, %v1489
    %v1504 = vsub.f32 %v1472, %v1491
    %v1505 = vsub.f32 %v1474, %v1493
    %v1506 = vsub.f32 %v1477, %v1495
    %v1507 = vsub.f32 %v1479, %v1497
    %v1508 = vsub.f32 %v1482, %v1499
    %v1509 = vsub.f32 %v1484, %v1501
    %v1510 = vmul.f32 %v1502, 1.442695
    %v1511 = vpow.pop %v1510
    %v1512 = vmul.f32 %v1503, 1.442695
    %v1513 = vpow.pop %v1512
    %v1514 = vmul.f32 %v1504, 1.442695
    %v1515 = vpow.pop %v1514
    %v1516 = vmul.f32 %v1505, 1.442695
    %v1517 = vpow.pop %v1516
    %v1518 = vmul.f32 %v1506, 1.442695
    %v1519 = vpow.pop %v1518
    %v1520 = vmul.f32 %v1507, 1.442695
    %v1521 = vpow.pop %v1520
    %v1522 = vmul.f32 %v1508, 1.442695
    %v1523 = vpow.pop %v1522
    %v1524 = vmul.f32 %v1509, 1.442695
    %v1525 = vpow.pop %v1524
    %1526 = vadd.xlane.f32.xlu0 %v1511
    %v1527 = vpop.xlane.xlu0 %1526
    %1528 = vadd.xlane.f32.xlu0 %v1513
    %v1529 = vpop.xlane.xlu0 %1528
    %1530 = vadd.xlane.f32.xlu0 %v1515
    %v1531 = vpop.xlane.xlu0 %1530
    %1532 = vadd.xlane.f32.xlu0 %v1517
    %v1533 = vpop.xlane.xlu0 %1532
    %1534 = vadd.xlane.f32.xlu0 %v1519
    %v1535 = vpop.xlane.xlu0 %1534
    %1536 = vadd.xlane.f32.xlu0 %v1521
    %v1537 = vpop.xlane.xlu0 %1536
    %1538 = vadd.xlane.f32.xlu0 %v1523
    %v1539 = vpop.xlane.xlu0 %1538
    %1540 = vadd.xlane.f32.xlu0 %v1525
    %v1541 = vpop.xlane.xlu0 %1540
    %v1542 = vrcp.pop %v1527
    %v1543 = vmul.f32 %v1527, %v1542
    %v1544 = vsub.f32 1.0, %v1543
    %v1545 = vmul.f32 %v1542, %v1544
    %v1546 = vadd.f32 %v1542, %v1545
    %vm1547 = vweird.f32 %v1527
    %vm1548 = vweird.f32 %v1542
    %vm1549 = vmor %vm1547, %vm1548
    %v1550 = vsel %vm1549, %v1542, %v1546
    %v1551 = vand.u32 2147483647, %v1527
    %vm1552 = vcmp.eq.f32.partialorder %v1551, 8.507059e+37
    %v1553 = vand.u32 %v1527, 2147483648
    %v1554 = vor.u32 1.1754944e-38, %v1553
    %v1555 = vsel %vm1552, %v1554, %v1550
    %v1556 = vmul.f32 %v1511, %v1555
    %v1557 = vrcp.pop %v1529
    %v1558 = vmul.f32 %v1529, %v1557
    %v1559 = vsub.f32 1.0, %v1558
    %v1560 = vmul.f32 %v1557, %v1559
    %v1561 = vadd.f32 %v1557, %v1560
    %vm1562 = vweird.f32 %v1529
    %vm1563 = vweird.f32 %v1557
    %vm1564 = vmor %vm1562, %vm1563
    %v1565 = vsel %vm1564, %v1557, %v1561
    %v1566 = vand.u32 2147483647, %v1529
    %vm1567 = vcmp.eq.f32.partialorder %v1566, 8.507059e+37
    %v1568 = vand.u32 %v1529, 2147483648
    %v1569 = vor.u32 1.1754944e-38, %v1568
    %v1570 = vsel %vm1567, %v1569, %v1565
    %v1571 = vmul.f32 %v1513, %v1570
    %v1572 = vrcp.pop %v1531
    %v1573 = vmul.f32 %v1531, %v1572
    %v1574 = vsub.f32 1.0, %v1573
    %v1575 = vmul.f32 %v1572, %v1574
    %v1576 = vadd.f32 %v1572, %v1575
    %vm1577 = vweird.f32 %v1531
    %vm1578 = vweird.f32 %v1572
    %vm1579 = vmor %vm1577, %vm1578
    %v1580 = vsel %vm1579, %v1572, %v1576
    %v1581 = vand.u32 2147483647, %v1531
    %vm1582 = vcmp.eq.f32.partialorder %v1581, 8.507059e+37
    %v1583 = vand.u32 %v1531, 2147483648
    %v1584 = vor.u32 1.1754944e-38, %v1583
    %v1585 = vsel %vm1582, %v1584, %v1580
    %v1586 = vmul.f32 %v1515, %v1585
    %v1587 = vrcp.pop %v1533
    %v1588 = vmul.f32 %v1533, %v1587
    %v1589 = vsub.f32 1.0, %v1588
    %v1590 = vmul.f32 %v1587, %v1589
    %v1591 = vadd.f32 %v1587, %v1590
    %vm1592 = vweird.f32 %v1533
    %vm1593 = vweird.f32 %v1587
    %vm1594 = vmor %vm1592, %vm1593
    %v1595 = vsel %vm1594, %v1587, %v1591
    %v1596 = vand.u32 2147483647, %v1533
    %vm1597 = vcmp.eq.f32.partialorder %v1596, 8.507059e+37
    %v1598 = vand.u32 %v1533, 2147483648
    %v1599 = vor.u32 1.1754944e-38, %v1598
    %v1600 = vsel %vm1597, %v1599, %v1595
    %v1601 = vmul.f32 %v1517, %v1600
    %v1602 = vrcp.pop %v1535
    %v1603 = vmul.f32 %v1535, %v1602
    %v1604 = vsub.f32 1.0, %v1603
    %v1605 = vmul.f32 %v1602, %v1604
    %v1606 = vadd.f32 %v1602, %v1605
    %vm1607 = vweird.f32 %v1535
    %vm1608 = vweird.f32 %v1602
    %vm1609 = vmor %vm1607, %vm1608
    %v1610 = vsel %vm1609, %v1602, %v1606
    %v1611 = vand.u32 2147483647, %v1535
    %vm1612 = vcmp.eq.f32.partialorder %v1611, 8.507059e+37
    %v1613 = vand.u32 %v1535, 2147483648
    %v1614 = vor.u32 1.1754944e-38, %v1613
    %v1615 = vsel %vm1612, %v1614, %v1610
    %v1616 = vmul.f32 %v1519, %v1615
    %v1617 = vrcp.pop %v1537
    %v1618 = vmul.f32 %v1537, %v1617
    %v1619 = vsub.f32 1.0, %v1618
    %v1620 = vmul.f32 %v1617, %v1619
    %v1621 = vadd.f32 %v1617, %v1620
    %vm1622 = vweird.f32 %v1537
    %vm1623 = vweird.f32 %v1617
    %vm1624 = vmor %vm1622, %vm1623
    %v1625 = vsel %vm1624, %v1617, %v1621
    %v1626 = vand.u32 2147483647, %v1537
    %vm1627 = vcmp.eq.f32.partialorder %v1626, 8.507059e+37
    %v1628 = vand.u32 %v1537, 2147483648
    %v1629 = vor.u32 1.1754944e-38, %v1628
    %v1630 = vsel %vm1627, %v1629, %v1625
    %v1631 = vmul.f32 %v1521, %v1630
    %v1632 = vrcp.pop %v1539
    %v1633 = vmul.f32 %v1539, %v1632
    %v1634 = vsub.f32 1.0, %v1633
    %v1635 = vmul.f32 %v1632, %v1634
    %v1636 = vadd.f32 %v1632, %v1635
    %vm1637 = vweird.f32 %v1539
    %vm1638 = vweird.f32 %v1632
    %vm1639 = vmor %vm1637, %vm1638
    %v1640 = vsel %vm1639, %v1632, %v1636
    %v1641 = vand.u32 2147483647, %v1539
    %vm1642 = vcmp.eq.f32.partialorder %v1641, 8.507059e+37
    %v1643 = vand.u32 %v1539, 2147483648
    %v1644 = vor.u32 1.1754944e-38, %v1643
    %v1645 = vsel %vm1642, %v1644, %v1640
    %v1646 = vmul.f32 %v1523, %v1645
    %v1647 = vrcp.pop %v1541
    %v1648 = vmul.f32 %v1541, %v1647
    %v1649 = vsub.f32 1.0, %v1648
    %v1650 = vmul.f32 %v1647, %v1649
    %v1651 = vadd.f32 %v1647, %v1650
    %vm1652 = vweird.f32 %v1541
    %vm1653 = vweird.f32 %v1647
    %vm1654 = vmor %vm1652, %vm1653
    %v1655 = vsel %vm1654, %v1647, %v1651
    %v1656 = vand.u32 2147483647, %v1541
    %vm1657 = vcmp.eq.f32.partialorder %v1656, 8.507059e+37
    %v1658 = vand.u32 %v1541, 2147483648
    %v1659 = vor.u32 1.1754944e-38, %v1658
    %v1660 = vsel %vm1657, %v1659, %v1655
    %v1661 = vmul.f32 %v1525, %v1660
    %1662 = vst [vmem:[%s9] sm:$0xff] %v1556
    %1663 = vst [vmem:[%s9 + $0x8] sm:$0xff] %v1571
    %1664 = vst [vmem:[%s9 + $0x10] sm:$0xff] %v1586
    %1665 = vst [vmem:[%s9 + $0x18] sm:$0xff] %v1601
    %1666 = vst [vmem:[%s9 + $0x20] sm:$0xff] %v1616
    %1667 = vst [vmem:[%s9 + $0x28] sm:$0xff] %v1631
    %1668 = vst [vmem:[%s9 + $0x30] sm:$0xff] %v1646
    %1669 = vst [vmem:[%s9 + $0x38] sm:$0xff] %v1661
    // Predicated region
    $region42: #{a2c_actor_forward.1} parent=1 // pred_check
      _
    $region43: #{a2c_actor_forward.1} parent=1 // pred_check_branch
      %1671 = sbr.rel (0) target = $region45
    $region44: #{a2c_actor_forward.1} parent=1 // pred_region
      _
    $region45: #{a2c_actor_forward.1} parent=1 // pred_fallthru
      _
    // Predicated region
    $region46: #{a2c_actor_forward.1} parent=1 // pred_check
      _
    $region47: #{a2c_actor_forward.1} parent=1 // pred_check_branch
      %1673 = sbr.rel (0) target = $region49
    $region48: #{a2c_actor_forward.1} parent=1 // pred_region
      _
    $region49: #{a2c_actor_forward.1} parent=1 // pred_fallthru
      _
    %1674 = vsyncpa [#allocation3], 1

</llo_original>
